<compile_context>
chip_gen: v7x
topology: tpu7x:2x2x1
jax: 0.10.0
libtpu: 0.0.40
codegen_flags: <defaults>
</compile_context>

<pallas_src>
import functools

import jax
import jax.numpy as jnp
from jax import lax
from jax.experimental import pallas as pl
from jax.experimental.pallas import tpu as pltpu

_LANE = 128
_VMEM_BLOCK_BUDGET = 8 * 1024 * 1024  # budget for double-buffered blocks + scratch


def _round_up(a, m):
    return -(-a // m) * m


def _cdiv(a, b):
    return -(-a // b)


def _single_tensorcore_chip():
    """True for v5e / v6e (one TensorCore per chip); default to 'multi-TC'."""
    try:
        kind = jax.devices()[0].device_kind.lower()
    except Exception:
        return False
    return any(s in kind for s in ("v5 lite", "v5e", "v6 lite", "v6e"))


def _pick_tile(n, i_dim, o_dim, k_dim, in_bytes, tile_b):
    """Lane-tile (batch columns per grid step): 128-multiple, VMEM-budget capped."""
    if n <= _LANE:
        return n  # single block spanning the whole (tiny) batch
    # Per-column VMEM: double-buffered input block (sublane padded), double-buffered
    # output block (lane padded to 128), feats scratch + elementwise intermediates.
    per_col = (2 * _round_up(i_dim, 8) * in_bytes
               + 2 * _round_up(o_dim, _LANE) * 4
               + (k_dim + 3 * i_dim) * 4)
    cap = max(_LANE, (_VMEM_BLOCK_BUDGET // per_col) // _LANE * _LANE)
    tb = min(_round_up(tile_b, _LANE), cap, (n // _LANE) * _LANE)
    if not _single_tensorcore_chip():
        # 2 TensorCores (v7x / megacore): keep >= 2 grid steps so the "parallel"
        # grid axis can be sharded across both cores.
        tb = min(tb, _round_up(_cdiv(n, 2), _LANE))
    return max(tb, _LANE)


def _chebykan_kernel(x_ref, w_ref, out_ref, feats_ref, *, fused_out):
    """x_ref: (I, TB) batch-on-lanes.  feats_ref: VMEM scratch (K, TB), K=(D+1)*I.

    fused_out=True : w_ref is (K, O), out_ref is (TB, O)  (batch-major output).
    fused_out=False: w_ref is (O, K), out_ref is (O, TB)  (lane-dense output).
    """
    i_dim = x_ref.shape[0]
    k_dim = feats_ref.shape[0]
    dp1 = k_dim // i_dim  # degree + 1

    # Chebyshev features of tanh(x), lane-dense, written at static row offsets.
    x = jnp.tanh(x_ref[...].astype(jnp.float32))          # (I, TB)
    t_pp = jnp.ones_like(x)                                # T_0
    feats_ref[0:i_dim, :] = t_pp
    if dp1 > 1:
        t_p = x                                            # T_1
        feats_ref[i_dim:2 * i_dim, :] = t_p
        for d in range(2, dp1):
            t = 2.0 * x * t_p - t_pp                       # T_d = 2 x T_{d-1} - T_{d-2}
            feats_ref[d * i_dim:(d + 1) * i_dim, :] = t
            t_pp, t_p = t_p, t
    feats = feats_ref[...]                                 # (K, TB), f32

    if fused_out:
        # (TB, O) = feats^T @ W on the MXU -> stored straight into the (N, O) output,
        # so no wrapper-side transpose of the dominant output stream is needed.
        out_ref[...] = lax.dot_general(
            feats, w_ref[...],
            dimension_numbers=(((0,), (0,)), ((), ())),
            preferred_element_type=jnp.float32,
        ).astype(out_ref.dtype)
    else:
        # (O, TB) = W @ feats (standard matmul); wrapper transposes afterwards.
        out_ref[...] = jnp.dot(
            w_ref[...], feats, preferred_element_type=jnp.float32,
        ).astype(out_ref.dtype)


def _compiler_params():
    return pltpu.CompilerParams(
        dimension_semantics=("parallel",),
        vmem_limit_bytes=32 * 1024 * 1024,
    )


@functools.partial(jax.jit, static_argnames=("tile_b",))
def _forward_fused(x2, coeffs, tile_b):
    """Preferred path: kernel writes the (N, O) output directly (no XLA transpose)."""
    n, i_dim = x2.shape
    _, o_dim, dp1 = coeffs.shape
    k_dim = dp1 * i_dim
    tb = _pick_tile(n, i_dim, o_dim, k_dim, x2.dtype.itemsize, tile_b)
    grid = (_cdiv(n, tb),)

    # (I, N): lane-dense feature rows.  Cheap (I << O); for stacked layers one would
    # keep activations in this (features, batch) layout and skip this copy too.
    x_t = x2.T
    # W[d*I + i, o] = C[i, o, d]
    w_ko = jnp.transpose(coeffs.astype(jnp.float32), (2, 0, 1)).reshape(k_dim, o_dim)

    kernel = functools.partial(_chebykan_kernel, fused_out=True)
    return pl.pallas_call(
        kernel,
        out_shape=jax.ShapeDtypeStruct((n, o_dim), jnp.float32),
        grid_spec=pltpu.PrefetchScalarGridSpec(
            num_scalar_prefetch=0,
            grid=grid,
            in_specs=[
                pl.BlockSpec((i_dim, tb), lambda i: (0, i)),
                pl.BlockSpec((k_dim, o_dim), lambda i: (0, 0)),   # VMEM-resident
            ],
            out_specs=pl.BlockSpec((tb, o_dim), lambda i: (i, 0)),
            scratch_shapes=[pltpu.VMEM((k_dim, tb), jnp.float32)],
        ),
        compiler_params=_compiler_params(),
    )(x_t, w_ko)


@functools.partial(jax.jit, static_argnames=("tile_b",))
def _forward_fallback(x2, coeffs, tile_b):
    """Fallback: lane-dense (O, N) kernel output + one XLA transpose."""
    n, i_dim = x2.shape
    _, o_dim, dp1 = coeffs.shape
    k_dim = dp1 * i_dim
    tb = _pick_tile(n, i_dim, o_dim, k_dim, x2.dtype.itemsize, tile_b)
    grid = (_cdiv(n, tb),)

    x_t = x2.T
    # W[o, d*I + i] = C[i, o, d]
    w_ok = jnp.transpose(coeffs.astype(jnp.float32), (1, 2, 0)).reshape(o_dim, k_dim)

    kernel = functools.partial(_chebykan_kernel, fused_out=False)
    out_t = pl.pallas_call(
        kernel,
        out_shape=jax.ShapeDtypeStruct((o_dim, n), jnp.float32),
        grid_spec=pltpu.PrefetchScalarGridSpec(
            num_scalar_prefetch=0,
            grid=grid,
            in_specs=[
                pl.BlockSpec((i_dim, tb), lambda i: (0, i)),
                pl.BlockSpec((o_dim, k_dim), lambda i: (0, 0)),   # VMEM-resident
            ],
            out_specs=pl.BlockSpec((o_dim, tb), lambda i: (0, i)),
            scratch_shapes=[pltpu.VMEM((k_dim, tb), jnp.float32)],
        ),
        compiler_params=_compiler_params(),
    )(x_t, w_ok)
    return out_t.T


_FUSED_OK = [True]  # flipped off if the batch-major-output path fails to lower


def chebykan_forward(x, cheby_coeffs, tile_b=4096):
    """ChebyKANLayer.forward.

    x: (..., input_dim)         (flattened like the PyTorch `view(-1, input_dim)`)
    cheby_coeffs: (input_dim, output_dim, degree + 1)
    returns: (N, output_dim), N = prod(x.shape) // input_dim
    """
    i_dim = cheby_coeffs.shape[0]
    x2 = x.reshape(-1, i_dim)
    if _FUSED_OK[0]:
        try:
            return _forward_fused(x2, cheby_coeffs, tile_b=tile_b)
        except Exception:
            _FUSED_OK[0] = False
    return _forward_fallback(x2, cheby_coeffs, tile_b=tile_b)


# ---- pure-JAX reference mirroring the PyTorch forward exactly ----
def _chebykan_ref(x, cheby_coeffs):
    i_dim, o_dim, dp1 = cheby_coeffs.shape
    x = x.reshape(-1, i_dim)
    x = jnp.tanh(x)
    x = jnp.broadcast_to(x[:, :, None], x.shape + (dp1,))
    # torch.clip(...) in the original is not in-place and its result is discarded -> no-op.
    x = jnp.arccos(x)
    x = x * jnp.arange(dp1, dtype=x.dtype)
    x = jnp.cos(x)
    return jnp.einsum("bid,iod->bo", x, cheby_coeffs)


def _init_coeffs(key, input_dim, output_dim, degree):
    std = 1.0 / (input_dim * (degree + 1))
    return std * jax.random.normal(
        key, (input_dim, output_dim, degree + 1), dtype=jnp.float32)


if __name__ == "__main__":
    key = jax.random.PRNGKey(0)
    kx, kx2, kc = jax.random.split(key, 3)

    input_dim, output_dim, degree = 2, 32, 3
    n = 1024
    x = jax.random.normal(kx, (n, input_dim), dtype=jnp.float32)
    coeffs = _init_coeffs(kc, input_dim, output_dim, degree)    # (2, 32, 4)

    out = jax.block_until_ready(chebykan_forward(x, coeffs))
    ref = _chebykan_ref(x, coeffs)
    assert out.shape == (n, output_dim), out.shape
    assert jnp.allclose(out, ref, atol=1e-3, rtol=1e-3), "mismatch vs reference"

    # Also exercise the partial edge block (batch not a multiple of the tile).
    n2 = 200
    xb = jax.random.normal(kx2, (n2, input_dim), dtype=jnp.float32)
    out2 = jax.block_until_ready(chebykan_forward(xb, coeffs))
    ref2 = _chebykan_ref(xb, coeffs)
    assert out2.shape == (n2, output_dim), out2.shape
    assert jnp.allclose(out2, ref2, atol=1e-3, rtol=1e-3), "mismatch vs reference (ragged)"

    print("KERNEL_OK")
</pallas_src>

<mosaic_0001>
module attributes {stable_mosaic.version = 11 : i64} {
  func.func @_chebykan_kernel(%arg0: i32, %arg1: memref<2x512xf32, #tpu.memory_space<vmem>>, %arg2: memref<8x32xf32, #tpu.memory_space<vmem>>, %arg3: memref<512x32xf32, #tpu.memory_space<vmem>>, %arg4: memref<8x512xf32, #tpu.memory_space<vmem>>) attributes {dimension_semantics = [#tpu.dimension_semantics<parallel>], iteration_bounds = array<i64: 2>, scalar_prefetch = 0 : i64, scratch_operands = 1 : i64, tpu.core_type = #tpu.core_type<tc>, window_params = [{transform_indices = @transform_0, window_bounds = array<i64: 2, 512>}, {pipeline_mode = #tpu.pipeline_mode<synchronous>, transform_indices = @transform_1, window_bounds = array<i64: 8, 32>}, {transform_indices = @transform_2, window_bounds = array<i64: 512, 32>}]} {
    %c0 = arith.constant 0 : index
    %c0_0 = arith.constant 0 : index
    %0 = vector.load %arg1[%c0, %c0_0] : memref<2x512xf32, #tpu.memory_space<vmem>>, vector<2x512xf32>
    %1 = math.tanh %0 : vector<2x512xf32>
    %cst = arith.constant 1.000000e+00 : f32
    %2 = vector.broadcast %cst : f32 to vector<2x512xf32>
    %c0_1 = arith.constant 0 : index
    %c0_2 = arith.constant 0 : index
    %3 = vector.load %arg4[%c0_1, %c0_2] : memref<8x512xf32, #tpu.memory_space<vmem>>, vector<2x512xf32>
    tpu.vector_store %arg4[%c0_1, %c0_2], %2 {strides = array<i32>} : memref<8x512xf32, #tpu.memory_space<vmem>>, vector<2x512xf32>,
    %c2 = arith.constant 2 : index
    %c0_3 = arith.constant 0 : index
    %4 = vector.load %arg4[%c2, %c0_3] : memref<8x512xf32, #tpu.memory_space<vmem>>, vector<2x512xf32>
    tpu.vector_store %arg4[%c2, %c0_3], %1 {strides = array<i32>} : memref<8x512xf32, #tpu.memory_space<vmem>>, vector<2x512xf32>,
    %cst_4 = arith.constant 2.000000e+00 : f32
    %5 = vector.broadcast %cst_4 : f32 to vector<2x512xf32>
    %6 = arith.mulf %5, %1 : vector<2x512xf32>
    %7 = arith.mulf %6, %1 : vector<2x512xf32>
    %8 = arith.subf %7, %2 : vector<2x512xf32>
    %c4 = arith.constant 4 : index
    %c0_5 = arith.constant 0 : index
    %9 = vector.load %arg4[%c4, %c0_5] : memref<8x512xf32, #tpu.memory_space<vmem>>, vector<2x512xf32>
    tpu.vector_store %arg4[%c4, %c0_5], %8 {strides = array<i32>} : memref<8x512xf32, #tpu.memory_space<vmem>>, vector<2x512xf32>,
    %cst_6 = arith.constant 2.000000e+00 : f32
    %10 = vector.broadcast %cst_6 : f32 to vector<2x512xf32>
    %11 = arith.mulf %10, %1 : vector<2x512xf32>
    %12 = arith.mulf %11, %8 : vector<2x512xf32>
    %13 = arith.subf %12, %1 : vector<2x512xf32>
    %c6 = arith.constant 6 : index
    %c0_7 = arith.constant 0 : index
    %14 = vector.load %arg4[%c6, %c0_7] : memref<8x512xf32, #tpu.memory_space<vmem>>, vector<2x512xf32>
    tpu.vector_store %arg4[%c6, %c0_7], %13 {strides = array<i32>} : memref<8x512xf32, #tpu.memory_space<vmem>>, vector<2x512xf32>,
    %c0_8 = arith.constant 0 : index
    %c0_9 = arith.constant 0 : index
    %15 = vector.load %arg4[%c0_8, %c0_9] : memref<8x512xf32, #tpu.memory_space<vmem>>, vector<8x512xf32>
    %c0_10 = arith.constant 0 : index
    %c0_11 = arith.constant 0 : index
    %16 = vector.load %arg2[%c0_10, %c0_11] : memref<8x32xf32, #tpu.memory_space<vmem>>, vector<8x32xf32>
    %cst_12 = arith.constant dense<0.000000e+00> : vector<512x32xf32>
    %17 = tpu.matmul %15, %16, %cst_12 {dimension_numbers = #tpu.dot_dimension_numbers<[0], [0], [1], [1], [0, 1, 1, 1], [], []>} : vector<8x512xf32>, vector<8x32xf32>, vector<512x32xf32> -> vector<512x32xf32>
    %c0_13 = arith.constant 0 : index
    %c0_14 = arith.constant 0 : index
    %18 = vector.load %arg3[%c0_13, %c0_14] : memref<512x32xf32, #tpu.memory_space<vmem>>, vector<512x32xf32>
    tpu.vector_store %arg3[%c0_13, %c0_14], %17 {strides = array<i32>} : memref<512x32xf32, #tpu.memory_space<vmem>>, vector<512x32xf32>,
    return
  }
  func.func @transform_0(%arg0: i32) -> (i32, i32) {
    %c0_i32 = arith.constant 0 : i32
    %c0_i32_0 = arith.constant 0 : i32
    return %c0_i32, %arg0 : i32, i32
  }
  func.func @transform_1(%arg0: i32) -> (i32, i32) {
    %c0_i32 = arith.constant 0 : i32
    %c0_i32_0 = arith.constant 0 : i32
    %c0_i32_1 = arith.constant 0 : i32
    return %c0_i32, %c0_i32_0 : i32, i32
  }
  func.func @transform_2(%arg0: i32) -> (i32, i32) {
    %c0_i32 = arith.constant 0 : i32
    %c0_i32_0 = arith.constant 0 : i32
    return %arg0, %c0_i32 : i32, i32
  }
}

module attributes {stable_mosaic.version = 11 : i64} {
  func.func @_chebykan_kernel(%arg0: i32, %arg1: memref<2x512xf32, #tpu.memory_space<vmem>>, %arg2: memref<32x8xf32, #tpu.memory_space<vmem>>, %arg3: memref<32x512xf32, #tpu.memory_space<vmem>>, %arg4: memref<8x512xf32, #tpu.memory_space<vmem>>) attributes {dimension_semantics = [#tpu.dimension_semantics<parallel>], iteration_bounds = array<i64: 2>, scalar_prefetch = 0 : i64, scratch_operands = 1 : i64, tpu.core_type = #tpu.core_type<tc>, window_params = [{transform_indices = @transform_0, window_bounds = array<i64: 2, 512>}, {pipeline_mode = #tpu.pipeline_mode<synchronous>, transform_indices = @transform_1, window_bounds = array<i64: 32, 8>}, {transform_indices = @transform_2, window_bounds = array<i64: 32, 512>}]} {
    %c0 = arith.constant 0 : index
    %c0_0 = arith.constant 0 : index
    %0 = vector.load %arg1[%c0, %c0_0] : memref<2x512xf32, #tpu.memory_space<vmem>>, vector<2x512xf32>
    %1 = math.tanh %0 : vector<2x512xf32>
    %cst = arith.constant 1.000000e+00 : f32
    %2 = vector.broadcast %cst : f32 to vector<2x512xf32>
    %c0_1 = arith.constant 0 : index
    %c0_2 = arith.constant 0 : index
    %3 = vector.load %arg4[%c0_1, %c0_2] : memref<8x512xf32, #tpu.memory_space<vmem>>, vector<2x512xf32>
    tpu.vector_store %arg4[%c0_1, %c0_2], %2 {strides = array<i32>} : memref<8x512xf32, #tpu.memory_space<vmem>>, vector<2x512xf32>,
    %c2 = arith.constant 2 : index
    %c0_3 = arith.constant 0 : index
    %4 = vector.load %arg4[%c2, %c0_3] : memref<8x512xf32, #tpu.memory_space<vmem>>, vector<2x512xf32>
    tpu.vector_store %arg4[%c2, %c0_3], %1 {strides = array<i32>} : memref<8x512xf32, #tpu.memory_space<vmem>>, vector<2x512xf32>,
    %cst_4 = arith.constant 2.000000e+00 : f32
    %5 = vector.broadcast %cst_4 : f32 to vector<2x512xf32>
    %6 = arith.mulf %5, %1 : vector<2x512xf32>
    %7 = arith.mulf %6, %1 : vector<2x512xf32>
    %8 = arith.subf %7, %2 : vector<2x512xf32>
    %c4 = arith.constant 4 : index
    %c0_5 = arith.constant 0 : index
    %9 = vector.load %arg4[%c4, %c0_5] : memref<8x512xf32, #tpu.memory_space<vmem>>, vector<2x512xf32>
    tpu.vector_store %arg4[%c4, %c0_5], %8 {strides = array<i32>} : memref<8x512xf32, #tpu.memory_space<vmem>>, vector<2x512xf32>,
    %cst_6 = arith.constant 2.000000e+00 : f32
    %10 = vector.broadcast %cst_6 : f32 to vector<2x512xf32>
    %11 = arith.mulf %10, %1 : vector<2x512xf32>
    %12 = arith.mulf %11, %8 : vector<2x512xf32>
    %13 = arith.subf %12, %1 : vector<2x512xf32>
    %c6 = arith.constant 6 : index
    %c0_7 = arith.constant 0 : index
    %14 = vector.load %arg4[%c6, %c0_7] : memref<8x512xf32, #tpu.memory_space<vmem>>, vector<2x512xf32>
    tpu.vector_store %arg4[%c6, %c0_7], %13 {strides = array<i32>} : memref<8x512xf32, #tpu.memory_space<vmem>>, vector<2x512xf32>,
    %c0_8 = arith.constant 0 : index
    %c0_9 = arith.constant 0 : index
    %15 = vector.load %arg4[%c0_8, %c0_9] : memref<8x512xf32, #tpu.memory_space<vmem>>, vector<8x512xf32>
    %c0_10 = arith.constant 0 : index
    %c0_11 = arith.constant 0 : index
    %16 = vector.load %arg2[%c0_10, %c0_11] : memref<32x8xf32, #tpu.memory_space<vmem>>, vector<32x8xf32>
    %cst_12 = arith.constant dense<0.000000e+00> : vector<32x512xf32>
    %17 = tpu.matmul %16, %15, %cst_12 {dimension_numbers = #tpu.dot_dimension_numbers<[1], [0], [0], [1], [0, 0, 1, 1], [], []>} : vector<32x8xf32>, vector<8x512xf32>, vector<32x512xf32> -> vector<32x512xf32>
    %c0_13 = arith.constant 0 : index
    %c0_14 = arith.constant 0 : index
    %18 = vector.load %arg3[%c0_13, %c0_14] : memref<32x512xf32, #tpu.memory_space<vmem>>, vector<32x512xf32>
    tpu.vector_store %arg3[%c0_13, %c0_14], %17 {strides = array<i32>} : memref<32x512xf32, #tpu.memory_space<vmem>>, vector<32x512xf32>,
    return
  }
  func.func @transform_0(%arg0: i32) -> (i32, i32) {
    %c0_i32 = arith.constant 0 : i32
    %c0_i32_0 = arith.constant 0 : i32
    return %c0_i32, %arg0 : i32, i32
  }
  func.func @transform_1(%arg0: i32) -> (i32, i32) {
    %c0_i32 = arith.constant 0 : i32
    %c0_i32_0 = arith.constant 0 : i32
    %c0_i32_1 = arith.constant 0 : i32
    return %c0_i32, %c0_i32_0 : i32, i32
  }
  func.func @transform_2(%arg0: i32) -> (i32, i32) {
    %c0_i32 = arith.constant 0 : i32
    %c0_i32_0 = arith.constant 0 : i32
    return %c0_i32, %arg0 : i32, i32
  }
}

</mosaic_0001>

<llo_original>
// kernel: _forward_fused.1
$region0: #{_forward_fused.1}
  #allocation0 [shape = 'u32[]', space=smem, size = 0x4, offset = 0x4, fixed_abs, tag = 'smem constant byte address 0x4 - core index']
  #allocation1 [shape = 'u32[144,128]{1,0:T(1,128)}', space=vmem, size = 0x12000, scoped, tag = 'internal scratch']
  #allocation2 [shape = 'f32[8,512]{1,0:T(8,128)}', space=vmem, size = 0x4000, scoped, tag = 'scratch operand']
  %s0 = inlined_call_operand.vmem [shape: f32[2,1024], index: 0, kind: input, shape index: {}]
  %s1 = inlined_call_operand.vmem [shape: f32[8,32], index: 1, kind: input, shape index: {}]
  %s2 = inlined_call_operand.vmem [shape: f32[1024,32], index: 2, kind: output, shape index: {}]
  %s3 = sld [smem:[#allocation0]]
  $region41: #{_forward_fused.1} parent=0
    _
  %s5 = ssub.s32 1, %s3
  %s6 = scalar_select 0, %s5, %s3
  loop: start=0, step=1, limit=4
  $region2: #{_forward_fused.1} parent=0 // loop_pre_header
    _
  $region3: #{_forward_fused.1} parent=0 // loop_header
    %s8 = sphi 0, %s12
    %p9 = scmp.ge.s32.totalorder %s8, 4
    %s18 = sphi 0, %s20
    %s21 = sphi 0, %s18
    %s22 = sphi 0, %s21
    %s38 = sphi 0, %s22
    %s42 = sphi 0, %s42
    %s44 = sphi 0, %s42
    %s45 = sphi 0, %s44
    %s59 = sphi 0, %s45
    %s65 = sphi 0, %s67
    %s68 = sphi 0, %s65
    %s69 = sphi 0, %s68
    %s85 = sphi 0, %s69
  $region4: #{_forward_fused.1} parent=0 // loop_header_branch
    %11 = sbr.rel (%p9) target = $region8
  $region5: #{_forward_fused.1} parent=0 // loop_body
    %s13 = ssub.s32 %s8, 1
    %s14 = ssub.s32 %s8, 2
    %s15 = sadd.s32 %s8, 1
    %s16 = ssub.s32 %s8, %s15
    %p17 = scmp.eq.s32.totalorder %s16, 0
    %s19 = sadd.s32 %s18, 1
    %s20 = scalar_select %p17, %s18, %s19
    %p23 = pneg %p17
    %p24 = scmp.eq.s32.totalorder %s8, 1
    %p25 = por %p23, %p24
    %p26 = scmp.ne.s32.totalorder %s18, %s21
    %p27 = scmp.eq.s32.totalorder %s8, 0
    %p28 = por %p26, %p27
    %p29 = scmp.ne.s32.totalorder %s18, %s21
    %p30 = scmp.eq.s32.totalorder %s13, 1
    %p31 = por %p29, %p30
    %p32 = scmp.ne.s32.totalorder %s21, %s22
    %p33 = scmp.eq.s32.totalorder %s13, 0
    %p34 = por %p32, %p33
    %p35 = scmp.ne.s32.totalorder %s21, %s22
    %p36 = scmp.eq.s32.totalorder %s14, 1
    %p37 = por %p35, %p36
    %p39 = scmp.ne.s32.totalorder %s22, %s38
    %p40 = scmp.eq.s32.totalorder %s14, 0
    %p41 = por %p39, %p40
    %s43 = sadd.s32 %s42, 1
    %p46 = scmp.eq.s32.totalorder %s8, 1
    %p47 = scmp.ne.s32.totalorder %s42, %s44
    %p48 = scmp.eq.s32.totalorder %s8, 0
    %p49 = por %p47, %p48
    %p50 = scmp.ne.s32.totalorder %s42, %s44
    %p51 = scmp.eq.s32.totalorder %s13, 1
    %p52 = por %p50, %p51
    %p53 = scmp.ne.s32.totalorder %s44, %s45
    %p54 = scmp.eq.s32.totalorder %s13, 0
    %p55 = por %p53, %p54
    %p56 = scmp.ne.s32.totalorder %s44, %s45
    %p57 = scmp.eq.s32.totalorder %s14, 1
    %p58 = por %p56, %p57
    %p60 = scmp.ne.s32.totalorder %s45, %s59
    %p61 = scmp.eq.s32.totalorder %s14, 0
    %p62 = por %p60, %p61
    %s63 = ssub.s32 %s8, %s15
    %p64 = scmp.eq.s32.totalorder %s63, 0
    %s66 = sadd.s32 %s65, 1
    %s67 = scalar_select %p64, %s65, %s66
    %p70 = pneg %p64
    %p71 = scmp.eq.s32.totalorder %s8, 1
    %p72 = por %p70, %p71
    %p73 = scmp.ne.s32.totalorder %s65, %s68
    %p74 = scmp.eq.s32.totalorder %s8, 0
    %p75 = por %p73, %p74
    %p76 = scmp.ne.s32.totalorder %s65, %s68
    %p77 = scmp.eq.s32.totalorder %s13, 1
    %p78 = por %p76, %p77
    %p79 = scmp.ne.s32.totalorder %s68, %s69
    %p80 = scmp.eq.s32.totalorder %s13, 0
    %p81 = por %p79, %p80
    %p82 = scmp.ne.s32.totalorder %s68, %s69
    %p83 = scmp.eq.s32.totalorder %s14, 1
    %p84 = por %p82, %p83
    %p86 = scmp.ne.s32.totalorder %s69, %s85
    %p87 = scmp.eq.s32.totalorder %s14, 0
    %p88 = por %p86, %p87
    %p89 = scmp.le.s32.totalorder 1, %s8
    %p90 = scmp.lt.s32.totalorder %s8, 3
    %p91 = pnand %p89, %p90
    %p92 = pneg %p91
    // Predicated region
    $region9: #{_forward_fused.1} parent=5 // pred_check
      _
    $region10: #{_forward_fused.1} parent=5 // pred_check_branch
      %94 = sbr.rel (%p91) target = $region12
    $region11: #{_forward_fused.1} parent=5 // pred_region
      %s95 = ssub.s32 %s8, 1
      // Predicated region
      $region13: #{_forward_fused.1} parent=11 // pred_check
        %p96 = pneg %p55
      $region14: #{_forward_fused.1} parent=11 // pred_check_branch
        %98 = sbr.rel (%p96) target = $region16
      $region15: #{_forward_fused.1} parent=11 // pred_region
        _
      $region16: #{_forward_fused.1} parent=11 // pred_fallthru
        _
    $region12: #{_forward_fused.1} parent=5 // pred_fallthru
      _
    %p99 = scmp.lt.s32.totalorder %s8, 2
    // Predicated region
    $region17: #{_forward_fused.1} parent=5 // pred_check
      %p100 = pneg %p99
    $region18: #{_forward_fused.1} parent=5 // pred_check_branch
      %102 = sbr.rel (%p100) target = $region20
    $region19: #{_forward_fused.1} parent=5 // pred_region
      // Predicated region
      $region21: #{_forward_fused.1} parent=19 // pred_check
        %p103 = pneg %p28
      $region22: #{_forward_fused.1} parent=19 // pred_check_branch
        %105 = sbr.rel (%p103) target = $region24
      $region23: #{_forward_fused.1} parent=19 // pred_region
        %s106 = smul.u32 4, %s8
        %p107 = scmp.lt.s32.totalorder %s106, 7
        %s108 = scalar_select %p107, %s106, 7
        %s109 = smul.addr %s108, 2
        %s110 = scalar_lea.vmem %s0, %s109
        %s111 = smul.u32 4, %s8
      $region24: #{_forward_fused.1} parent=19 // pred_fallthru
        _
    $region20: #{_forward_fused.1} parent=5 // pred_fallthru
      _
    %p112 = scmp.le.s32.totalorder 1, %s8
    %p113 = scmp.lt.s32.totalorder %s8, 3
    %p114 = pnand %p112, %p113
    %p115 = pneg %p114
    // Predicated region
    $region25: #{_forward_fused.1} parent=5 // pred_check
      _
    $region26: #{_forward_fused.1} parent=5 // pred_check_branch
      %117 = sbr.rel (%p114) target = $region28
    $region27: #{_forward_fused.1} parent=5 // pred_region
      %s118 = ssub.s32 %s8, 1
      %s119 = smul.u32 4, %s13
      %p120 = scmp.lt.s32.totalorder %s119, 7
      %s121 = scalar_select %p120, %s119, 7
      %s122 = smul.addr %s121, 2
      %s123 = scalar_lea.vmem %s0, %s122
      %p124 = pneg %p34
      %p125 = pneg %p31
      %p126 = pneg %p55
      %p127 = pneg %p52
      %p128 = pneg %p81
      %p129 = pneg %p78
      %s130 = smul.u32 64, %s13
      %p131 = scmp.lt.s32.totalorder %s130, 127
      %s132 = scalar_select %p131, %s130, 127
      %s133 = smul.addr %s132, 8
      %s134 = scalar_lea.vmem %s2, %s133
      %s135 = smul.u32 4, %s13
      %p136 = scmp.lt.s32.totalorder %s135, 7
      %s137 = scalar_select %p136, %s135, 7
      %s138 = smul.addr %s137, 2
      %s139 = scalar_lea.vmem %s0, %s138
      %s140 = smul.u32 4, %s13
      %s141 = smul.u32 64, %s13
      %p142 = scmp.lt.s32.totalorder %s141, 127
      %s143 = scalar_select %p142, %s141, 127
      %s144 = smul.addr %s143, 8
      %s145 = scalar_lea.vmem %s2, %s144
      %s146 = smul.u32 64, %s13
      %v147 = vld [vmem:[%s139] sm:$0xff]
      %v148 = vtanh.pop %v147
      %149 = vst [vmem:[#allocation2] sm:$0x3] 1.0
      %150 = vst [vmem:[#allocation2 + $0x8] sm:$0x3] 1.0
      %151 = vst [vmem:[#allocation2 + $0x10] sm:$0x3] 1.0
      %152 = vst [vmem:[#allocation2 + $0x18] sm:$0x3] 1.0
      %v154 = vcombine.low %v148, %v148
      %v156 = vunpack.c.l.s4 1983009808
      %v157 = vunpack.c.0.s8 %v156
      %v158 = vlaneseq
      %v159 = vshrl.u32 %v158, 7
      %v160 = vsub.s32 %v157, %v159
      %v161 = vrot.slane %v154, %v160
      %v163 = vunpack.c.l.s4 1983009808
      %v164 = vunpack.c.0.s8 %v163
      %v165 = vlaneseq
      %v166 = vshrl.u32 %v165, 7
      %v167 = vsub.s32 %v164, %v166
      %v168 = vrot.slane %v148, %v167
      %v169 = vcombine.high %v161, %v161
      %v170 = vcombine.high %v168, %v168
      %175 = vst [vmem:[#allocation2] sm:$0xc] %v161
      %176 = vst [vmem:[#allocation2 + $0x8] sm:$0xc] %v169
      %177 = vst [vmem:[#allocation2 + $0x10] sm:$0xc] %v168
      %178 = vst [vmem:[#allocation2 + $0x18] sm:$0xc] %v170
      %v179 = vmul.f32 %v148, 2.0
      %v180 = vmul.f32 %v179, %v148
      %v181 = vsub.f32 %v180, 1.0
      %v183 = vcombine.high %v181, %v181
      %v185 = vunpack.c.l.s4 1983009808
      %v186 = vunpack.c.0.s8 %v185
      %v187 = vlaneseq
      %v188 = vshrl.u32 %v187, 7
      %v189 = vsub.s32 %v186, %v188
      %v190 = vrot.slane %v181, %v189
      %v192 = vunpack.c.l.s4 1983009808
      %v193 = vunpack.c.0.s8 %v192
      %v194 = vlaneseq
      %v195 = vshrl.u32 %v194, 7
      %v196 = vsub.s32 %v193, %v195
      %v197 = vrot.slane %v183, %v196
      %v198 = vcombine.low %v190, %v190
      %v199 = vcombine.low %v197, %v197
      %204 = vst [vmem:[#allocation2] sm:$0x30] %v198
      %205 = vst [vmem:[#allocation2 + $0x8] sm:$0x30] %v190
      %206 = vst [vmem:[#allocation2 + $0x10] sm:$0x30] %v199
      %207 = vst [vmem:[#allocation2 + $0x18] sm:$0x30] %v197
      %v208 = vmul.f32 %v179, %v181
      %v209 = vsub.f32 %v208, %v148
      %v211 = vcombine.low %v209, %v209
      %v213 = vunpack.c.l.s4 1983009808
      %v214 = vunpack.c.0.s8 %v213
      %v215 = vlaneseq
      %v216 = vshrl.u32 %v215, 7
      %v217 = vsub.s32 %v214, %v216
      %v218 = vrot.slane %v211, %v217
      %v220 = vunpack.c.l.s4 1983009808
      %v221 = vunpack.c.0.s8 %v220
      %v222 = vlaneseq
      %v223 = vshrl.u32 %v222, 7
      %v224 = vsub.s32 %v221, %v223
      %v225 = vrot.slane %v209, %v224
      %v226 = vcombine.low %v218, %v218
      %v227 = vcombine.low %v225, %v225
      %232 = vst [vmem:[#allocation2] sm:$0xc0] %v226
      %233 = vst [vmem:[#allocation2 + $0x8] sm:$0xc0] %v218
      %234 = vst [vmem:[#allocation2 + $0x10] sm:$0xc0] %v227
      %235 = vst [vmem:[#allocation2 + $0x18] sm:$0xc0] %v225
      %v236 = vld [vmem:[#allocation2] sm:$0xff]
      %v237 = vld [vmem:[#allocation2 + $0x8] sm:$0xff]
      %v238 = vld [vmem:[#allocation2 + $0x10] sm:$0xff]
      %v239 = vld [vmem:[#allocation2 + $0x18] sm:$0xff]
      %v240 = vld [vmem:[%s1] sm:$0xff]
      %241 = vxpose.xlu0.b32.start [1/16] %v236, 128
      %242 = vxpose.xlu0.b32.cont [2/16] 0.0, 128
      %243 = vxpose.xlu0.b32.cont [3/16] 0.0, 128
      %244 = vxpose.xlu0.b32.cont [4/16] 0.0, 128
      %245 = vxpose.xlu0.b32.cont [5/16] 0.0, 128
      %246 = vxpose.xlu0.b32.cont [6/16] 0.0, 128
      %247 = vxpose.xlu0.b32.cont [7/16] 0.0, 128
      %248 = vxpose.xlu0.b32.cont [8/16] 0.0, 128
      %249 = vxpose.xlu0.b32.cont [9/16] 0.0, 128
      %250 = vxpose.xlu0.b32.cont [10/16] 0.0, 128
      %251 = vxpose.xlu0.b32.cont [11/16] 0.0, 128
      %252 = vxpose.xlu0.b32.cont [12/16] 0.0, 128
      %253 = vxpose.xlu0.b32.cont [13/16] 0.0, 128
      %254 = vxpose.xlu0.b32.cont [14/16] 0.0, 128
      %255 = vxpose.xlu0.b32.cont [15/16] 0.0, 128
      %256 = vxpose.xlu0.b32.end [16/16] 0.0, 128
      %v257 = vpop.trf.xlu0
      %v258 = vpop.trf.xlu0
      %v259 = vpop.trf.xlu0
      %v260 = vpop.trf.xlu0
      %v261 = vpop.trf.xlu0
      %v262 = vpop.trf.xlu0
      %v263 = vpop.trf.xlu0
      %v264 = vpop.trf.xlu0
      %v265 = vpop.trf.xlu0
      %v266 = vpop.trf.xlu0
      %v267 = vpop.trf.xlu0
      %v268 = vpop.trf.xlu0
      %v269 = vpop.trf.xlu0
      %v270 = vpop.trf.xlu0
      %v271 = vpop.trf.xlu0
      %v272 = vpop.trf.xlu0
      %273 = vxpose.xlu0.b32.start [1/16] %v237, 128
      %274 = vxpose.xlu0.b32.cont [2/16] 0.0, 128
      %275 = vxpose.xlu0.b32.cont [3/16] 0.0, 128
      %276 = vxpose.xlu0.b32.cont [4/16] 0.0, 128
      %277 = vxpose.xlu0.b32.cont [5/16] 0.0, 128
      %278 = vxpose.xlu0.b32.cont [6/16] 0.0, 128
      %279 = vxpose.xlu0.b32.cont [7/16] 0.0, 128
      %280 = vxpose.xlu0.b32.cont [8/16] 0.0, 128
      %281 = vxpose.xlu0.b32.cont [9/16] 0.0, 128
      %282 = vxpose.xlu0.b32.cont [10/16] 0.0, 128
      %283 = vxpose.xlu0.b32.cont [11/16] 0.0, 128
      %284 = vxpose.xlu0.b32.cont [12/16] 0.0, 128
      %285 = vxpose.xlu0.b32.cont [13/16] 0.0, 128
      %286 = vxpose.xlu0.b32.cont [14/16] 0.0, 128
      %287 = vxpose.xlu0.b32.cont [15/16] 0.0, 128
      %288 = vxpose.xlu0.b32.end [16/16] 0.0, 128
      %v289 = vpop.trf.xlu0
      %v290 = vpop.trf.xlu0
      %v291 = vpop.trf.xlu0
      %v292 = vpop.trf.xlu0
      %v293 = vpop.trf.xlu0
      %v294 = vpop.trf.xlu0
      %v295 = vpop.trf.xlu0
      %v296 = vpop.trf.xlu0
      %v297 = vpop.trf.xlu0
      %v298 = vpop.trf.xlu0
      %v299 = vpop.trf.xlu0
      %v300 = vpop.trf.xlu0
      %v301 = vpop.trf.xlu0
      %v302 = vpop.trf.xlu0
      %v303 = vpop.trf.xlu0
      %v304 = vpop.trf.xlu0
      %305 = vxpose.xlu0.b32.start [1/16] %v238, 128
      %306 = vxpose.xlu0.b32.cont [2/16] 0.0, 128
      %307 = vxpose.xlu0.b32.cont [3/16] 0.0, 128
      %308 = vxpose.xlu0.b32.cont [4/16] 0.0, 128
      %309 = vxpose.xlu0.b32.cont [5/16] 0.0, 128
      %310 = vxpose.xlu0.b32.cont [6/16] 0.0, 128
      %311 = vxpose.xlu0.b32.cont [7/16] 0.0, 128
      %312 = vxpose.xlu0.b32.cont [8/16] 0.0, 128
      %313 = vxpose.xlu0.b32.cont [9/16] 0.0, 128
      %314 = vxpose.xlu0.b32.cont [10/16] 0.0, 128
      %315 = vxpose.xlu0.b32.cont [11/16] 0.0, 128
      %316 = vxpose.xlu0.b32.cont [12/16] 0.0, 128
      %317 = vxpose.xlu0.b32.cont [13/16] 0.0, 128
      %318 = vxpose.xlu0.b32.cont [14/16] 0.0, 128
      %319 = vxpose.xlu0.b32.cont [15/16] 0.0, 128
      %320 = vxpose.xlu0.b32.end [16/16] 0.0, 128
      %v321 = vpop.trf.xlu0
      %v322 = vpop.trf.xlu0
      %v323 = vpop.trf.xlu0
      %v324 = vpop.trf.xlu0
      %v325 = vpop.trf.xlu0
      %v326 = vpop.trf.xlu0
      %v327 = vpop.trf.xlu0
      %v328 = vpop.trf.xlu0
      %v329 = vpop.trf.xlu0
      %v330 = vpop.trf.xlu0
      %v331 = vpop.trf.xlu0
      %v332 = vpop.trf.xlu0
      %v333 = vpop.trf.xlu0
      %v334 = vpop.trf.xlu0
      %v335 = vpop.trf.xlu0
      %v336 = vpop.trf.xlu0
      %337 = vxpose.xlu0.b32.start [1/16] %v239, 128
      %338 = vxpose.xlu0.b32.cont [2/16] 0.0, 128
      %339 = vxpose.xlu0.b32.cont [3/16] 0.0, 128
      %340 = vxpose.xlu0.b32.cont [4/16] 0.0, 128
      %341 = vxpose.xlu0.b32.cont [5/16] 0.0, 128
      %342 = vxpose.xlu0.b32.cont [6/16] 0.0, 128
      %343 = vxpose.xlu0.b32.cont [7/16] 0.0, 128
      %344 = vxpose.xlu0.b32.cont [8/16] 0.0, 128
      %345 = vxpose.xlu0.b32.cont [9/16] 0.0, 128
      %346 = vxpose.xlu0.b32.cont [10/16] 0.0, 128
      %347 = vxpose.xlu0.b32.cont [11/16] 0.0, 128
      %348 = vxpose.xlu0.b32.cont [12/16] 0.0, 128
      %349 = vxpose.xlu0.b32.cont [13/16] 0.0, 128
      %350 = vxpose.xlu0.b32.cont [14/16] 0.0, 128
      %351 = vxpose.xlu0.b32.cont [15/16] 0.0, 128
      %352 = vxpose.xlu0.b32.end [16/16] 0.0, 128
      %v353 = vpop.trf.xlu0
      %v354 = vpop.trf.xlu0
      %v355 = vpop.trf.xlu0
      %v356 = vpop.trf.xlu0
      %v357 = vpop.trf.xlu0
      %v358 = vpop.trf.xlu0
      %v359 = vpop.trf.xlu0
      %v360 = vpop.trf.xlu0
      %v361 = vpop.trf.xlu0
      %v362 = vpop.trf.xlu0
      %v363 = vpop.trf.xlu0
      %v364 = vpop.trf.xlu0
      %v365 = vpop.trf.xlu0
      %v366 = vpop.trf.xlu0
      %v367 = vpop.trf.xlu0
      %v368 = vpop.trf.xlu0
      %vm369 = vcmask 64512
      %v371 = vsel %vm369, %v257, 0
      %v374 = vsel %vm369, %v258, 0
      %v377 = vsel %vm369, %v259, 0
      %v380 = vsel %vm369, %v260, 0
      %v383 = vsel %vm369, %v261, 0
      %v386 = vsel %vm369, %v262, 0
      %v389 = vsel %vm369, %v263, 0
      %v392 = vsel %vm369, %v264, 0
      %v395 = vsel %vm369, %v265, 0
      %v398 = vsel %vm369, %v266, 0
      %v401 = vsel %vm369, %v267, 0
      %v404 = vsel %vm369, %v268, 0
      %v407 = vsel %vm369, %v269, 0
      %v410 = vsel %vm369, %v270, 0
      %v413 = vsel %vm369, %v271, 0
      %v416 = vsel %vm369, %v272, 0
      %v419 = vsel %vm369, %v289, 0
      %v422 = vsel %vm369, %v290, 0
      %v425 = vsel %vm369, %v291, 0
      %v428 = vsel %vm369, %v292, 0
      %v431 = vsel %vm369, %v293, 0
      %v434 = vsel %vm369, %v294, 0
      %v437 = vsel %vm369, %v295, 0
      %v440 = vsel %vm369, %v296, 0
      %v443 = vsel %vm369, %v297, 0
      %v446 = vsel %vm369, %v298, 0
      %v449 = vsel %vm369, %v299, 0
      %v452 = vsel %vm369, %v300, 0
      %v455 = vsel %vm369, %v301, 0
      %v458 = vsel %vm369, %v302, 0
      %v461 = vsel %vm369, %v303, 0
      %v464 = vsel %vm369, %v304, 0
      %v467 = vsel %vm369, %v321, 0
      %v470 = vsel %vm369, %v322, 0
      %v473 = vsel %vm369, %v323, 0
      %v476 = vsel %vm369, %v324, 0
      %v479 = vsel %vm369, %v325, 0
      %v482 = vsel %vm369, %v326, 0
      %v485 = vsel %vm369, %v327, 0
      %v488 = vsel %vm369, %v328, 0
      %v491 = vsel %vm369, %v329, 0
      %v494 = vsel %vm369, %v330, 0
      %v497 = vsel %vm369, %v331, 0
      %v500 = vsel %vm369, %v332, 0
      %v503 = vsel %vm369, %v333, 0
      %v506 = vsel %vm369, %v334, 0
      %v509 = vsel %vm369, %v335, 0
      %v512 = vsel %vm369, %v336, 0
      %v515 = vsel %vm369, %v353, 0
      %v518 = vsel %vm369, %v354, 0
      %v521 = vsel %vm369, %v355, 0
      %v524 = vsel %vm369, %v356, 0
      %v527 = vsel %vm369, %v357, 0
      %v530 = vsel %vm369, %v358, 0
      %v533 = vsel %vm369, %v359, 0
      %v536 = vsel %vm369, %v360, 0
      %v539 = vsel %vm369, %v361, 0
      %v542 = vsel %vm369, %v362, 0
      %v545 = vsel %vm369, %v363, 0
      %v548 = vsel %vm369, %v364, 0
      %v551 = vsel %vm369, %v365, 0
      %v554 = vsel %vm369, %v366, 0
      %v557 = vsel %vm369, %v367, 0
      %v560 = vsel %vm369, %v368, 0
      %562 = vmatprep.subr.mxu0 0.0
      %563 = vmatpush1.msra.mxu0 %v240
      %564 = vmatprep.subr.mxu0 0.0
      %565 = vmatpush1.msra.mxu0 0.0
      %566 = vmatprep.subr.mxu0 0.0
      %567 = vmatpush1.msra.mxu0 0.0
      %568 = vmatprep.subr.mxu0 0.0
      %569 = vmatpush1.msra.mxu0 0.0
      %570 = vmatprep.subr.mxu0 0.0
      %571 = vmatpush1.msra.mxu0 0.0
      %572 = vmatprep.subr.mxu0 0.0
      %573 = vmatpush1.msra.mxu0 0.0
      %574 = vmatprep.subr.mxu0 0.0
      %575 = vmatpush1.msra.mxu0 0.0
      %576 = vmatprep.subr.mxu0 0.0
      %577 = vmatpush1.msra.mxu0 0.0
      %578 = vmatprep.subr.mxu0 0.0
      %579 = vmatpush1.msra.mxu0 0.0
      %580 = vmatprep.subr.mxu0 0.0
      %581 = vmatpush1.msra.mxu0 0.0
      %582 = vmatprep.subr.mxu0 0.0
      %583 = vmatpush1.msra.mxu0 0.0
      %584 = vmatprep.subr.mxu0 0.0
      %585 = vmatpush1.msra.mxu0 0.0
      %586 = vmatprep.subr.mxu0 0.0
      %587 = vmatpush1.msra.mxu0 0.0
      %588 = vmatprep.subr.mxu0 0.0
      %589 = vmatpush1.msra.mxu0 0.0
      %590 = vmatprep.subr.mxu0 0.0
      %591 = vmatpush1.msra.mxu0 0.0
      %592 = vmatprep.subr.mxu0 0.0
      %593 = vmatpush1.msra.mxu0 0.0
      %594 = vmatprep.subr.mxu0 0.0
      %595 = vmatpush1.msra.mxu0 0.0
      %596 = vmatprep.subr.mxu0 0.0
      %597 = vmatpush1.msra.mxu0 0.0
      %598 = vmatprep.subr.mxu0 0.0
      %599 = vmatpush1.msra.mxu0 0.0
      %600 = vmatprep.subr.mxu0 0.0
      %601 = vmatpush1.msra.mxu0 0.0
      %602 = vmatprep.subr.mxu0 0.0
      %603 = vmatpush1.msra.mxu0 0.0
      %604 = vmatprep.subr.mxu0 0.0
      %605 = vmatpush1.msra.mxu0 0.0
      %606 = vmatprep.subr.mxu0 0.0
      %607 = vmatpush1.msra.mxu0 0.0
      %608 = vmatprep.subr.mxu0 0.0
      %609 = vmatpush1.msra.mxu0 0.0
      %610 = vmatprep.subr.mxu0 0.0
      %611 = vmatpush1.msra.mxu0 0.0
      %612 = vmatprep.subr.mxu0 0.0
      %613 = vmatpush1.msra.mxu0 0.0
      %614 = vmatprep.subr.mxu0 0.0
      %615 = vmatpush1.msra.mxu0 0.0
      %616 = vmatprep.subr.mxu0 0.0
      %617 = vmatpush1.msra.mxu0 0.0
      %618 = vmatprep.subr.mxu0 0.0
      %619 = vmatpush1.msra.mxu0 0.0
      %620 = vmatprep.subr.mxu0 0.0
      %621 = vmatpush1.msra.mxu0 0.0
      %622 = vmatprep.subr.mxu0 0.0
      %623 = vmatpush1.msra.mxu0 0.0
      %624 = vmatprep.subr.mxu0 0.0
      %625 = vmatpush1.msra.mxu0 0.0
      %626 = vmatprep.mubr.f32.mxu0 0.0
      %627 = vmatmul.mubr.f32.gmra.mrb[0].mxu0 %v371
      %v628 = vpop.f32.mrb[0].mxu0
      %v629 = vadd.f32 0.0, %v628
      %v630 = vpop.f32.mrb[0].mxu0
      %631 = vmatprep.mubr.f32.mxu0 0.0
      %632 = vmatmul.mubr.f32.gmra.mrb[0].mxu0 %v374
      %v633 = vpop.f32.mrb[0].mxu0
      %v634 = vadd.f32 0.0, %v633
      %v635 = vpop.f32.mrb[0].mxu0
      %636 = vmatprep.mubr.f32.mxu0 0.0
      %637 = vmatmul.mubr.f32.gmra.mrb[0].mxu0 %v377
      %v638 = vpop.f32.mrb[0].mxu0
      %v639 = vadd.f32 0.0, %v638
      %v640 = vpop.f32.mrb[0].mxu0
      %641 = vmatprep.mubr.f32.mxu0 0.0
      %642 = vmatmul.mubr.f32.gmra.mrb[0].mxu0 %v380
      %v643 = vpop.f32.mrb[0].mxu0
      %v644 = vadd.f32 0.0, %v643
      %v645 = vpop.f32.mrb[0].mxu0
      %646 = vmatprep.mubr.f32.mxu0 0.0
      %647 = vmatmul.mubr.f32.gmra.mrb[0].mxu0 %v383
      %v648 = vpop.f32.mrb[0].mxu0
      %v649 = vadd.f32 0.0, %v648
      %v650 = vpop.f32.mrb[0].mxu0
      %651 = vmatprep.mubr.f32.mxu0 0.0
      %652 = vmatmul.mubr.f32.gmra.mrb[0].mxu0 %v386
      %v653 = vpop.f32.mrb[0].mxu0
      %v654 = vadd.f32 0.0, %v653
      %v655 = vpop.f32.mrb[0].mxu0
      %656 = vmatprep.mubr.f32.mxu0 0.0
      %657 = vmatmul.mubr.f32.gmra.mrb[0].mxu0 %v389
      %v658 = vpop.f32.mrb[0].mxu0
      %v659 = vadd.f32 0.0, %v658
      %v660 = vpop.f32.mrb[0].mxu0
      %661 = vmatprep.mubr.f32.mxu0 0.0
      %662 = vmatmul.mubr.f32.gmra.mrb[0].mxu0 %v392
      %v663 = vpop.f32.mrb[0].mxu0
      %v664 = vadd.f32 0.0, %v663
      %v665 = vpop.f32.mrb[0].mxu0
      %666 = vmatprep.mubr.f32.mxu0 0.0
      %667 = vmatmul.mubr.f32.gmra.mrb[0].mxu0 %v395
      %v668 = vpop.f32.mrb[0].mxu0
      %v669 = vadd.f32 0.0, %v668
      %v670 = vpop.f32.mrb[0].mxu0
      %671 = vmatprep.mubr.f32.mxu0 0.0
      %672 = vmatmul.mubr.f32.gmra.mrb[0].mxu0 %v398
      %v673 = vpop.f32.mrb[0].mxu0
      %v674 = vadd.f32 0.0, %v673
      %v675 = vpop.f32.mrb[0].mxu0
      %676 = vmatprep.mubr.f32.mxu0 0.0
      %677 = vmatmul.mubr.f32.gmra.mrb[0].mxu0 %v401
      %v678 = vpop.f32.mrb[0].mxu0
      %v679 = vadd.f32 0.0, %v678
      %v680 = vpop.f32.mrb[0].mxu0
      %681 = vmatprep.mubr.f32.mxu0 0.0
      %682 = vmatmul.mubr.f32.gmra.mrb[0].mxu0 %v404
      %v683 = vpop.f32.mrb[0].mxu0
      %v684 = vadd.f32 0.0, %v683
      %v685 = vpop.f32.mrb[0].mxu0
      %686 = vmatprep.mubr.f32.mxu0 0.0
      %687 = vmatmul.mubr.f32.gmra.mrb[0].mxu0 %v407
      %v688 = vpop.f32.mrb[0].mxu0
      %v689 = vadd.f32 0.0, %v688
      %v690 = vpop.f32.mrb[0].mxu0
      %691 = vmatprep.mubr.f32.mxu0 0.0
      %692 = vmatmul.mubr.f32.gmra.mrb[0].mxu0 %v410
      %v693 = vpop.f32.mrb[0].mxu0
      %v694 = vadd.f32 0.0, %v693
      %v695 = vpop.f32.mrb[0].mxu0
      %696 = vmatprep.mubr.f32.mxu0 0.0
      %697 = vmatmul.mubr.f32.gmra.mrb[0].mxu0 %v413
      %v698 = vpop.f32.mrb[0].mxu0
      %v699 = vadd.f32 0.0, %v698
      %v700 = vpop.f32.mrb[0].mxu0
      %701 = vmatprep.mubr.f32.mxu0 0.0
      %702 = vmatmul.mubr.f32.gmra.mrb[0].mxu0 %v416
      %v703 = vpop.f32.mrb[0].mxu0
      %v704 = vadd.f32 0.0, %v703
      %v705 = vpop.f32.mrb[0].mxu0
      %706 = vmatprep.mubr.f32.mxu0 0.0
      %707 = vmatmul.mubr.f32.gmra.mrb[0].mxu0 %v419
      %v708 = vpop.f32.mrb[0].mxu0
      %v709 = vadd.f32 0.0, %v708
      %v710 = vpop.f32.mrb[0].mxu0
      %711 = vmatprep.mubr.f32.mxu0 0.0
      %712 = vmatmul.mubr.f32.gmra.mrb[0].mxu0 %v422
      %v713 = vpop.f32.mrb[0].mxu0
      %v714 = vadd.f32 0.0, %v713
      %v715 = vpop.f32.mrb[0].mxu0
      %716 = vmatprep.mubr.f32.mxu0 0.0
      %717 = vmatmul.mubr.f32.gmra.mrb[0].mxu0 %v425
      %v718 = vpop.f32.mrb[0].mxu0
      %v719 = vadd.f32 0.0, %v718
      %v720 = vpop.f32.mrb[0].mxu0
      %721 = vmatprep.mubr.f32.mxu0 0.0
      %722 = vmatmul.mubr.f32.gmra.mrb[0].mxu0 %v428
      %v723 = vpop.f32.mrb[0].mxu0
      %v724 = vadd.f32 0.0, %v723
      %v725 = vpop.f32.mrb[0].mxu0
      %726 = vmatprep.mubr.f32.mxu0 0.0
      %727 = vmatmul.mubr.f32.gmra.mrb[0].mxu0 %v431
      %v728 = vpop.f32.mrb[0].mxu0
      %v729 = vadd.f32 0.0, %v728
      %v730 = vpop.f32.mrb[0].mxu0
      %731 = vmatprep.mubr.f32.mxu0 0.0
      %732 = vmatmul.mubr.f32.gmra.mrb[0].mxu0 %v434
      %v733 = vpop.f32.mrb[0].mxu0
      %v734 = vadd.f32 0.0, %v733
      %v735 = vpop.f32.mrb[0].mxu0
      %736 = vmatprep.mubr.f32.mxu0 0.0
      %737 = vmatmul.mubr.f32.gmra.mrb[0].mxu0 %v437
      %v738 = vpop.f32.mrb[0].mxu0
      %v739 = vadd.f32 0.0, %v738
      %v740 = vpop.f32.mrb[0].mxu0
      %741 = vmatprep.mubr.f32.mxu0 0.0
      %742 = vmatmul.mubr.f32.gmra.mrb[0].mxu0 %v440
      %v743 = vpop.f32.mrb[0].mxu0
      %v744 = vadd.f32 0.0, %v743
      %v745 = vpop.f32.mrb[0].mxu0
      %746 = vmatprep.mubr.f32.mxu0 0.0
      %747 = vmatmul.mubr.f32.gmra.mrb[0].mxu0 %v443
      %v748 = vpop.f32.mrb[0].mxu0
      %v749 = vadd.f32 0.0, %v748
      %v750 = vpop.f32.mrb[0].mxu0
      %751 = vmatprep.mubr.f32.mxu0 0.0
      %752 = vmatmul.mubr.f32.gmra.mrb[0].mxu0 %v446
      %v753 = vpop.f32.mrb[0].mxu0
      %v754 = vadd.f32 0.0, %v753
      %v755 = vpop.f32.mrb[0].mxu0
      %756 = vmatprep.mubr.f32.mxu0 0.0
      %757 = vmatmul.mubr.f32.gmra.mrb[0].mxu0 %v449
      %v758 = vpop.f32.mrb[0].mxu0
      %v759 = vadd.f32 0.0, %v758
      %v760 = vpop.f32.mrb[0].mxu0
      %761 = vmatprep.mubr.f32.mxu0 0.0
      %762 = vmatmul.mubr.f32.gmra.mrb[0].mxu0 %v452
      %v763 = vpop.f32.mrb[0].mxu0
      %v764 = vadd.f32 0.0, %v763
      %v765 = vpop.f32.mrb[0].mxu0
      %766 = vmatprep.mubr.f32.mxu0 0.0
      %767 = vmatmul.mubr.f32.gmra.mrb[0].mxu0 %v455
      %v768 = vpop.f32.mrb[0].mxu0
      %v769 = vadd.f32 0.0, %v768
      %v770 = vpop.f32.mrb[0].mxu0
      %771 = vmatprep.mubr.f32.mxu0 0.0
      %772 = vmatmul.mubr.f32.gmra.mrb[0].mxu0 %v458
      %v773 = vpop.f32.mrb[0].mxu0
      %v774 = vadd.f32 0.0, %v773
      %v775 = vpop.f32.mrb[0].mxu0
      %776 = vmatprep.mubr.f32.mxu0 0.0
      %777 = vmatmul.mubr.f32.gmra.mrb[0].mxu0 %v461
      %v778 = vpop.f32.mrb[0].mxu0
      %v779 = vadd.f32 0.0, %v778
      %v780 = vpop.f32.mrb[0].mxu0
      %781 = vmatprep.mubr.f32.mxu0 0.0
      %782 = vmatmul.mubr.f32.gmra.mrb[0].mxu0 %v464
      %v783 = vpop.f32.mrb[0].mxu0
      %v784 = vadd.f32 0.0, %v783
      %v785 = vpop.f32.mrb[0].mxu0
      %786 = vmatprep.mubr.f32.mxu0 0.0
      %787 = vmatmul.mubr.f32.gmra.mrb[0].mxu0 %v467
      %v788 = vpop.f32.mrb[0].mxu0
      %v789 = vadd.f32 0.0, %v788
      %v790 = vpop.f32.mrb[0].mxu0
      %791 = vmatprep.mubr.f32.mxu0 0.0
      %792 = vmatmul.mubr.f32.gmra.mrb[0].mxu0 %v470
      %v793 = vpop.f32.mrb[0].mxu0
      %v794 = vadd.f32 0.0, %v793
      %v795 = vpop.f32.mrb[0].mxu0
      %796 = vmatprep.mubr.f32.mxu0 0.0
      %797 = vmatmul.mubr.f32.gmra.mrb[0].mxu0 %v473
      %v798 = vpop.f32.mrb[0].mxu0
      %v799 = vadd.f32 0.0, %v798
      %v800 = vpop.f32.mrb[0].mxu0
      %801 = vmatprep.mubr.f32.mxu0 0.0
      %802 = vmatmul.mubr.f32.gmra.mrb[0].mxu0 %v476
      %v803 = vpop.f32.mrb[0].mxu0
      %v804 = vadd.f32 0.0, %v803
      %v805 = vpop.f32.mrb[0].mxu0
      %806 = vmatprep.mubr.f32.mxu0 0.0
      %807 = vmatmul.mubr.f32.gmra.mrb[0].mxu0 %v479
      %v808 = vpop.f32.mrb[0].mxu0
      %v809 = vadd.f32 0.0, %v808
      %v810 = vpop.f32.mrb[0].mxu0
      %811 = vmatprep.mubr.f32.mxu0 0.0
      %812 = vmatmul.mubr.f32.gmra.mrb[0].mxu0 %v482
      %v813 = vpop.f32.mrb[0].mxu0
      %v814 = vadd.f32 0.0, %v813
      %v815 = vpop.f32.mrb[0].mxu0
      %816 = vmatprep.mubr.f32.mxu0 0.0
      %817 = vmatmul.mubr.f32.gmra.mrb[0].mxu0 %v485
      %v818 = vpop.f32.mrb[0].mxu0
      %v819 = vadd.f32 0.0, %v818
      %v820 = vpop.f32.mrb[0].mxu0
      %821 = vmatprep.mubr.f32.mxu0 0.0
      %822 = vmatmul.mubr.f32.gmra.mrb[0].mxu0 %v488
      %v823 = vpop.f32.mrb[0].mxu0
      %v824 = vadd.f32 0.0, %v823
      %v825 = vpop.f32.mrb[0].mxu0
      %826 = vmatprep.mubr.f32.mxu0 0.0
      %827 = vmatmul.mubr.f32.gmra.mrb[0].mxu0 %v491
      %v828 = vpop.f32.mrb[0].mxu0
      %v829 = vadd.f32 0.0, %v828
      %v830 = vpop.f32.mrb[0].mxu0
      %831 = vmatprep.mubr.f32.mxu0 0.0
      %832 = vmatmul.mubr.f32.gmra.mrb[0].mxu0 %v494
      %v833 = vpop.f32.mrb[0].mxu0
      %v834 = vadd.f32 0.0, %v833
      %v835 = vpop.f32.mrb[0].mxu0
      %836 = vmatprep.mubr.f32.mxu0 0.0
      %837 = vmatmul.mubr.f32.gmra.mrb[0].mxu0 %v497
      %v838 = vpop.f32.mrb[0].mxu0
      %v839 = vadd.f32 0.0, %v838
      %v840 = vpop.f32.mrb[0].mxu0
      %841 = vmatprep.mubr.f32.mxu0 0.0
      %842 = vmatmul.mubr.f32.gmra.mrb[0].mxu0 %v500
      %v843 = vpop.f32.mrb[0].mxu0
      %v844 = vadd.f32 0.0, %v843
      %v845 = vpop.f32.mrb[0].mxu0
      %846 = vmatprep.mubr.f32.mxu0 0.0
      %847 = vmatmul.mubr.f32.gmra.mrb[0].mxu0 %v503
      %v848 = vpop.f32.mrb[0].mxu0
      %v849 = vadd.f32 0.0, %v848
      %v850 = vpop.f32.mrb[0].mxu0
      %851 = vmatprep.mubr.f32.mxu0 0.0
      %852 = vmatmul.mubr.f32.gmra.mrb[0].mxu0 %v506
      %v853 = vpop.f32.mrb[0].mxu0
      %v854 = vadd.f32 0.0, %v853
      %v855 = vpop.f32.mrb[0].mxu0
      %856 = vmatprep.mubr.f32.mxu0 0.0
      %857 = vmatmul.mubr.f32.gmra.mrb[0].mxu0 %v509
      %v858 = vpop.f32.mrb[0].mxu0
      %v859 = vadd.f32 0.0, %v858
      %v860 = vpop.f32.mrb[0].mxu0
      %861 = vmatprep.mubr.f32.mxu0 0.0
      %862 = vmatmul.mubr.f32.gmra.mrb[0].mxu0 %v512
      %v863 = vpop.f32.mrb[0].mxu0
      %v864 = vadd.f32 0.0, %v863
      %v865 = vpop.f32.mrb[0].mxu0
      %866 = vmatprep.mubr.f32.mxu0 0.0
      %867 = vmatmul.mubr.f32.gmra.mrb[0].mxu0 %v515
      %v868 = vpop.f32.mrb[0].mxu0
      %v869 = vadd.f32 0.0, %v868
      %v870 = vpop.f32.mrb[0].mxu0
      %871 = vmatprep.mubr.f32.mxu0 0.0
      %872 = vmatmul.mubr.f32.gmra.mrb[0].mxu0 %v518
      %v873 = vpop.f32.mrb[0].mxu0
      %v874 = vadd.f32 0.0, %v873
      %v875 = vpop.f32.mrb[0].mxu0
      %876 = vmatprep.mubr.f32.mxu0 0.0
      %877 = vmatmul.mubr.f32.gmra.mrb[0].mxu0 %v521
      %v878 = vpop.f32.mrb[0].mxu0
      %v879 = vadd.f32 0.0, %v878
      %v880 = vpop.f32.mrb[0].mxu0
      %881 = vmatprep.mubr.f32.mxu0 0.0
      %882 = vmatmul.mubr.f32.gmra.mrb[0].mxu0 %v524
      %v883 = vpop.f32.mrb[0].mxu0
      %v884 = vadd.f32 0.0, %v883
      %v885 = vpop.f32.mrb[0].mxu0
      %886 = vmatprep.mubr.f32.mxu0 0.0
      %887 = vmatmul.mubr.f32.gmra.mrb[0].mxu0 %v527
      %v888 = vpop.f32.mrb[0].mxu0
      %v889 = vadd.f32 0.0, %v888
      %v890 = vpop.f32.mrb[0].mxu0
      %891 = vmatprep.mubr.f32.mxu0 0.0
      %892 = vmatmul.mubr.f32.gmra.mrb[0].mxu0 %v530
      %v893 = vpop.f32.mrb[0].mxu0
      %v894 = vadd.f32 0.0, %v893
      %v895 = vpop.f32.mrb[0].mxu0
      %896 = vmatprep.mubr.f32.mxu0 0.0
      %897 = vmatmul.mubr.f32.gmra.mrb[0].mxu0 %v533
      %v898 = vpop.f32.mrb[0].mxu0
      %v899 = vadd.f32 0.0, %v898
      %v900 = vpop.f32.mrb[0].mxu0
      %901 = vmatprep.mubr.f32.mxu0 0.0
      %902 = vmatmul.mubr.f32.gmra.mrb[0].mxu0 %v536
      %v903 = vpop.f32.mrb[0].mxu0
      %v904 = vadd.f32 0.0, %v903
      %v905 = vpop.f32.mrb[0].mxu0
      %906 = vmatprep.mubr.f32.mxu0 0.0
      %907 = vmatmul.mubr.f32.gmra.mrb[0].mxu0 %v539
      %v908 = vpop.f32.mrb[0].mxu0
      %v909 = vadd.f32 0.0, %v908
      %v910 = vpop.f32.mrb[0].mxu0
      %911 = vmatprep.mubr.f32.mxu0 0.0
      %912 = vmatmul.mubr.f32.gmra.mrb[0].mxu0 %v542
      %v913 = vpop.f32.mrb[0].mxu0
      %v914 = vadd.f32 0.0, %v913
      %v915 = vpop.f32.mrb[0].mxu0
      %916 = vmatprep.mubr.f32.mxu0 0.0
      %917 = vmatmul.mubr.f32.gmra.mrb[0].mxu0 %v545
      %v918 = vpop.f32.mrb[0].mxu0
      %v919 = vadd.f32 0.0, %v918
      %v920 = vpop.f32.mrb[0].mxu0
      %921 = vmatprep.mubr.f32.mxu0 0.0
      %922 = vmatmul.mubr.f32.gmra.mrb[0].mxu0 %v548
      %v923 = vpop.f32.mrb[0].mxu0
      %v924 = vadd.f32 0.0, %v923
      %v925 = vpop.f32.mrb[0].mxu0
      %926 = vmatprep.mubr.f32.mxu0 0.0
      %927 = vmatmul.mubr.f32.gmra.mrb[0].mxu0 %v551
      %v928 = vpop.f32.mrb[0].mxu0
      %v929 = vadd.f32 0.0, %v928
      %v930 = vpop.f32.mrb[0].mxu0
      %931 = vmatprep.mubr.f32.mxu0 0.0
      %932 = vmatmul.mubr.f32.gmra.mrb[0].mxu0 %v554
      %v933 = vpop.f32.mrb[0].mxu0
      %v934 = vadd.f32 0.0, %v933
      %v935 = vpop.f32.mrb[0].mxu0
      %936 = vmatprep.mubr.f32.mxu0 0.0
      %937 = vmatmul.mubr.f32.gmra.mrb[0].mxu0 %v557
      %v938 = vpop.f32.mrb[0].mxu0
      %v939 = vadd.f32 0.0, %v938
      %v940 = vpop.f32.mrb[0].mxu0
      %941 = vmatprep.mubr.f32.mxu0 0.0
      %942 = vmatmul.mubr.f32.gmra.mrb[0].mxu0 %v560
      %v943 = vpop.f32.mrb[0].mxu0
      %v944 = vadd.f32 0.0, %v943
      %v945 = vpop.f32.mrb[0].mxu0
      %946 = vdwg.mxu0
      %vm947 = vcmask 261120
      %948 = vst.msk [vmem:[%s145] sm:$0xff] %vm947, %v629
      %949 = vst.msk [vmem:[%s145 + $0x8] sm:$0xff] %vm947, %v634
      %950 = vst.msk [vmem:[%s145 + $0x10] sm:$0xff] %vm947, %v639
      %951 = vst.msk [vmem:[%s145 + $0x18] sm:$0xff] %vm947, %v644
      %952 = vst.msk [vmem:[%s145 + $0x20] sm:$0xff] %vm947, %v649
      %953 = vst.msk [vmem:[%s145 + $0x28] sm:$0xff] %vm947, %v654
      %954 = vst.msk [vmem:[%s145 + $0x30] sm:$0xff] %vm947, %v659
      %955 = vst.msk [vmem:[%s145 + $0x38] sm:$0xff] %vm947, %v664
      %956 = vst.msk [vmem:[%s145 + $0x40] sm:$0xff] %vm947, %v669
      %957 = vst.msk [vmem:[%s145 + $0x48] sm:$0xff] %vm947, %v674
      %958 = vst.msk [vmem:[%s145 + $0x50] sm:$0xff] %vm947, %v679
      %959 = vst.msk [vmem:[%s145 + $0x58] sm:$0xff] %vm947, %v684
      %960 = vst.msk [vmem:[%s145 + $0x60] sm:$0xff] %vm947, %v689
      %961 = vst.msk [vmem:[%s145 + $0x68] sm:$0xff] %vm947, %v694
      %962 = vst.msk [vmem:[%s145 + $0x70] sm:$0xff] %vm947, %v699
      %963 = vst.msk [vmem:[%s145 + $0x78] sm:$0xff] %vm947, %v704
      %964 = vst.msk [vmem:[%s145 + $0x80] sm:$0xff] %vm947, %v709
      %965 = vst.msk [vmem:[%s145 + $0x88] sm:$0xff] %vm947, %v714
      %966 = vst.msk [vmem:[%s145 + $0x90] sm:$0xff] %vm947, %v719
      %967 = vst.msk [vmem:[%s145 + $0x98] sm:$0xff] %vm947, %v724
      %968 = vst.msk [vmem:[%s145 + $0xa0] sm:$0xff] %vm947, %v729
      %969 = vst.msk [vmem:[%s145 + $0xa8] sm:$0xff] %vm947, %v734
      %970 = vst.msk [vmem:[%s145 + $0xb0] sm:$0xff] %vm947, %v739
      %971 = vst.msk [vmem:[%s145 + $0xb8] sm:$0xff] %vm947, %v744
      %972 = vst.msk [vmem:[%s145 + $0xc0] sm:$0xff] %vm947, %v749
      %973 = vst.msk [vmem:[%s145 + $0xc8] sm:$0xff] %vm947, %v754
      %974 = vst.msk [vmem:[%s145 + $0xd0] sm:$0xff] %vm947, %v759
      %975 = vst.msk [vmem:[%s145 + $0xd8] sm:$0xff] %vm947, %v764
      %976 = vst.msk [vmem:[%s145 + $0xe0] sm:$0xff] %vm947, %v769
      %977 = vst.msk [vmem:[%s145 + $0xe8] sm:$0xff] %vm947, %v774
      %978 = vst.msk [vmem:[%s145 + $0xf0] sm:$0xff] %vm947, %v779
      %979 = vst.msk [vmem:[%s145 + $0xf8] sm:$0xff] %vm947, %v784
      %980 = vst.msk [vmem:[%s145 + $0x100] sm:$0xff] %vm947, %v789
      %981 = vst.msk [vmem:[%s145 + $0x108] sm:$0xff] %vm947, %v794
      %982 = vst.msk [vmem:[%s145 + $0x110] sm:$0xff] %vm947, %v799
      %983 = vst.msk [vmem:[%s145 + $0x118] sm:$0xff] %vm947, %v804
      %984 = vst.msk [vmem:[%s145 + $0x120] sm:$0xff] %vm947, %v809
      %985 = vst.msk [vmem:[%s145 + $0x128] sm:$0xff] %vm947, %v814
      %986 = vst.msk [vmem:[%s145 + $0x130] sm:$0xff] %vm947, %v819
      %987 = vst.msk [vmem:[%s145 + $0x138] sm:$0xff] %vm947, %v824
      %988 = vst.msk [vmem:[%s145 + $0x140] sm:$0xff] %vm947, %v829
      %989 = vst.msk [vmem:[%s145 + $0x148] sm:$0xff] %vm947, %v834
      %990 = vst.msk [vmem:[%s145 + $0x150] sm:$0xff] %vm947, %v839
      %991 = vst.msk [vmem:[%s145 + $0x158] sm:$0xff] %vm947, %v844
      %992 = vst.msk [vmem:[%s145 + $0x160] sm:$0xff] %vm947, %v849
      %993 = vst.msk [vmem:[%s145 + $0x168] sm:$0xff] %vm947, %v854
      %994 = vst.msk [vmem:[%s145 + $0x170] sm:$0xff] %vm947, %v859
      %995 = vst.msk [vmem:[%s145 + $0x178] sm:$0xff] %vm947, %v864
      %996 = vst.msk [vmem:[%s145 + $0x180] sm:$0xff] %vm947, %v869
      %997 = vst.msk [vmem:[%s145 + $0x188] sm:$0xff] %vm947, %v874
      %998 = vst.msk [vmem:[%s145 + $0x190] sm:$0xff] %vm947, %v879
      %999 = vst.msk [vmem:[%s145 + $0x198] sm:$0xff] %vm947, %v884
      %1000 = vst.msk [vmem:[%s145 + $0x1a0] sm:$0xff] %vm947, %v889
      %1001 = vst.msk [vmem:[%s145 + $0x1a8] sm:$0xff] %vm947, %v894
      %1002 = vst.msk [vmem:[%s145 + $0x1b0] sm:$0xff] %vm947, %v899
      %1003 = vst.msk [vmem:[%s145 + $0x1b8] sm:$0xff] %vm947, %v904
      %1004 = vst.msk [vmem:[%s145 + $0x1c0] sm:$0xff] %vm947, %v909
      %1005 = vst.msk [vmem:[%s145 + $0x1c8] sm:$0xff] %vm947, %v914
      %1006 = vst.msk [vmem:[%s145 + $0x1d0] sm:$0xff] %vm947, %v919
      %1007 = vst.msk [vmem:[%s145 + $0x1d8] sm:$0xff] %vm947, %v924
      %1008 = vst.msk [vmem:[%s145 + $0x1e0] sm:$0xff] %vm947, %v929
      %1009 = vst.msk [vmem:[%s145 + $0x1e8] sm:$0xff] %vm947, %v934
      %1010 = vst.msk [vmem:[%s145 + $0x1f0] sm:$0xff] %vm947, %v939
      %1011 = vst.msk [vmem:[%s145 + $0x1f8] sm:$0xff] %vm947, %v944
      %s1012 = smul.u32 64, %s13
      %p1013 = scmp.lt.s32.totalorder %s1012, 127
      %s1014 = scalar_select %p1013, %s1012, 127
      %s1015 = smul.addr %s1014, 8
      %s1016 = scalar_lea.vmem %s2, %s1015
      // Predicated region
      $region29: #{_forward_fused.1} parent=27 // pred_check
        %p1017 = pneg %p78
      $region30: #{_forward_fused.1} parent=27 // pred_check_branch
        %1019 = sbr.rel (%p1017) target = $region32
      $region31: #{_forward_fused.1} parent=27 // pred_region
        %s1020 = smul.u32 64, %s13
      $region32: #{_forward_fused.1} parent=27 // pred_fallthru
        _
    $region28: #{_forward_fused.1} parent=5 // pred_fallthru
      _
    %p1021 = scmp.le.s32.totalorder 2, %s8
    // Predicated region
    $region33: #{_forward_fused.1} parent=5 // pred_check
      %p1022 = pneg %p1021
    $region34: #{_forward_fused.1} parent=5 // pred_check_branch
      %1024 = sbr.rel (%p1022) target = $region36
    $region35: #{_forward_fused.1} parent=5 // pred_region
      %s1025 = ssub.s32 %s8, 2
      // Predicated region
      $region37: #{_forward_fused.1} parent=35 // pred_check
        %p1026 = pneg %p84
      $region38: #{_forward_fused.1} parent=35 // pred_check_branch
        %1028 = sbr.rel (%p1026) target = $region40
      $region39: #{_forward_fused.1} parent=35 // pred_region
        %s1029 = smul.u32 64, %s14
        %p1030 = scmp.lt.s32.totalorder %s1029, 127
        %s1031 = scalar_select %p1030, %s1029, 127
        %s1032 = smul.addr %s1031, 8
        %s1033 = scalar_lea.vmem %s2, %s1032
      $region40: #{_forward_fused.1} parent=35 // pred_fallthru
        _
    $region36: #{_forward_fused.1} parent=5 // pred_fallthru
      _
  $region6: #{_forward_fused.1} parent=0 // loop_footer
    %s12 = sadd.s32 1, %s8
  $region7: #{_forward_fused.1} parent=0 // loop_footer_branch
    %7 = sbr.rel target = $region3
  $region8: #{_forward_fused.1} parent=0 // loop_exit
    _

// kernel: _forward_fallback.1
$region0: #{_forward_fallback.1}
  #allocation0 [shape = 'u32[]', space=smem, size = 0x4, offset = 0x4, fixed_abs, tag = 'smem constant byte address 0x4 - core index']
  #allocation1 [shape = 'u32[144,128]{1,0:T(1,128)}', space=vmem, size = 0x12000, scoped, tag = 'internal scratch']
  #allocation2 [shape = 'f32[8,512]{1,0:T(8,128)}', space=vmem, size = 0x4000, scoped, tag = 'scratch operand']
  %s0 = inlined_call_operand.vmem [shape: f32[2,1024], index: 0, kind: input, shape index: {}]
  %s1 = inlined_call_operand.vmem [shape: f32[32,8], index: 1, kind: input, shape index: {}]
  %s2 = inlined_call_operand.hbm [shape: f32[32,1024], index: 2, kind: output, shape index: {}]
  %s3 = sld [smem:[#allocation0]]
  $region41: #{_forward_fallback.1} parent=0
    _
  %s5 = ssub.s32 1, %s3
  %s6 = scalar_select 0, %s5, %s3
  $region1: #{_forward_fallback.1} parent=0
    #allocation3 [shape = 'u8[131072]{0}', space=vmem, size = 0x20000, scoped, tag = 'output window, operand 0']
    #allocation4 [shape = 's32[2]{0}', space=sflag, size = 0x8, scoped, tag = 'scoped memory for _forward_fallback.1']
    %7 = vsyncpa [#allocation4], 0
    %s8 = scalar_lea.sflag [#allocation4], 1
    %9 = vsyncpa %s8, 0
    loop: start=0, step=1, limit=4
    $region2: #{_forward_fallback.1} parent=1 // loop_pre_header
      _
    $region3: #{_forward_fallback.1} parent=1 // loop_header
      %s11 = sphi 0, %s15
      %p12 = scmp.ge.s32.totalorder %s11, 4
      %s21 = sphi 0, %s23
      %s24 = sphi 0, %s21
      %s25 = sphi 0, %s24
      %s41 = sphi 0, %s25
      %s45 = sphi 0, %s45
      %s47 = sphi 0, %s45
      %s48 = sphi 0, %s47
      %s62 = sphi 0, %s48
      %s68 = sphi 0, %s70
      %s71 = sphi 0, %s68
      %s72 = sphi 0, %s71
      %s88 = sphi 0, %s72
    $region4: #{_forward_fallback.1} parent=1 // loop_header_branch
      %14 = sbr.rel (%p12) target = $region8
    $region5: #{_forward_fallback.1} parent=1 // loop_body
      %s16 = ssub.s32 %s11, 1
      %s17 = ssub.s32 %s11, 2
      %s18 = sadd.s32 %s11, 1
      %s19 = ssub.s32 %s11, %s18
      %p20 = scmp.eq.s32.totalorder %s19, 0
      %s22 = sadd.s32 %s21, 1
      %s23 = scalar_select %p20, %s21, %s22
      %p26 = pneg %p20
      %p27 = scmp.eq.s32.totalorder %s11, 1
      %p28 = por %p26, %p27
      %p29 = scmp.ne.s32.totalorder %s21, %s24
      %p30 = scmp.eq.s32.totalorder %s11, 0
      %p31 = por %p29, %p30
      %p32 = scmp.ne.s32.totalorder %s21, %s24
      %p33 = scmp.eq.s32.totalorder %s16, 1
      %p34 = por %p32, %p33
      %p35 = scmp.ne.s32.totalorder %s24, %s25
      %p36 = scmp.eq.s32.totalorder %s16, 0
      %p37 = por %p35, %p36
      %p38 = scmp.ne.s32.totalorder %s24, %s25
      %p39 = scmp.eq.s32.totalorder %s17, 1
      %p40 = por %p38, %p39
      %p42 = scmp.ne.s32.totalorder %s25, %s41
      %p43 = scmp.eq.s32.totalorder %s17, 0
      %p44 = por %p42, %p43
      %s46 = sadd.s32 %s45, 1
      %p49 = scmp.eq.s32.totalorder %s11, 1
      %p50 = scmp.ne.s32.totalorder %s45, %s47
      %p51 = scmp.eq.s32.totalorder %s11, 0
      %p52 = por %p50, %p51
      %p53 = scmp.ne.s32.totalorder %s45, %s47
      %p54 = scmp.eq.s32.totalorder %s16, 1
      %p55 = por %p53, %p54
      %p56 = scmp.ne.s32.totalorder %s47, %s48
      %p57 = scmp.eq.s32.totalorder %s16, 0
      %p58 = por %p56, %p57
      %p59 = scmp.ne.s32.totalorder %s47, %s48
      %p60 = scmp.eq.s32.totalorder %s17, 1
      %p61 = por %p59, %p60
      %p63 = scmp.ne.s32.totalorder %s48, %s62
      %p64 = scmp.eq.s32.totalorder %s17, 0
      %p65 = por %p63, %p64
      %s66 = ssub.s32 %s11, %s18
      %p67 = scmp.eq.s32.totalorder %s66, 0
      %s69 = sadd.s32 %s68, 1
      %s70 = scalar_select %p67, %s68, %s69
      %p73 = pneg %p67
      %p74 = scmp.eq.s32.totalorder %s11, 1
      %p75 = por %p73, %p74
      %p76 = scmp.ne.s32.totalorder %s68, %s71
      %p77 = scmp.eq.s32.totalorder %s11, 0
      %p78 = por %p76, %p77
      %p79 = scmp.ne.s32.totalorder %s68, %s71
      %p80 = scmp.eq.s32.totalorder %s16, 1
      %p81 = por %p79, %p80
      %p82 = scmp.ne.s32.totalorder %s71, %s72
      %p83 = scmp.eq.s32.totalorder %s16, 0
      %p84 = por %p82, %p83
      %p85 = scmp.ne.s32.totalorder %s71, %s72
      %p86 = scmp.eq.s32.totalorder %s17, 1
      %p87 = por %p85, %p86
      %p89 = scmp.ne.s32.totalorder %s72, %s88
      %p90 = scmp.eq.s32.totalorder %s17, 0
      %p91 = por %p89, %p90
      %p92 = scmp.le.s32.totalorder 1, %s11
      %p93 = scmp.lt.s32.totalorder %s11, 3
      %p94 = pnand %p92, %p93
      %p95 = pneg %p94
      // Predicated region
      $region9: #{_forward_fallback.1} parent=5 // pred_check
        _
      $region10: #{_forward_fallback.1} parent=5 // pred_check_branch
        %97 = sbr.rel (%p94) target = $region12
      $region11: #{_forward_fallback.1} parent=5 // pred_region
        %s98 = ssub.s32 %s11, 1
        // Predicated region
        $region13: #{_forward_fallback.1} parent=11 // pred_check
          %p99 = pneg %p58
        $region14: #{_forward_fallback.1} parent=11 // pred_check_branch
          %101 = sbr.rel (%p99) target = $region16
        $region15: #{_forward_fallback.1} parent=11 // pred_region
          _
        $region16: #{_forward_fallback.1} parent=11 // pred_fallthru
          _
      $region12: #{_forward_fallback.1} parent=5 // pred_fallthru
        _
      %p102 = scmp.lt.s32.totalorder %s11, 2
      // Predicated region
      $region17: #{_forward_fallback.1} parent=5 // pred_check
        %p103 = pneg %p102
      $region18: #{_forward_fallback.1} parent=5 // pred_check_branch
        %105 = sbr.rel (%p103) target = $region20
      $region19: #{_forward_fallback.1} parent=5 // pred_region
        // Predicated region
        $region21: #{_forward_fallback.1} parent=19 // pred_check
          %p106 = pneg %p31
        $region22: #{_forward_fallback.1} parent=19 // pred_check_branch
          %108 = sbr.rel (%p106) target = $region24
        $region23: #{_forward_fallback.1} parent=19 // pred_region
          %s109 = smul.u32 4, %s11
          %p110 = scmp.lt.s32.totalorder %s109, 7
          %s111 = scalar_select %p110, %s109, 7
          %s112 = smul.addr %s111, 2
          %s113 = scalar_lea.vmem %s0, %s112
          %s114 = smul.u32 4, %s11
        $region24: #{_forward_fallback.1} parent=19 // pred_fallthru
          _
      $region20: #{_forward_fallback.1} parent=5 // pred_fallthru
        _
      %p115 = scmp.le.s32.totalorder 1, %s11
      %p116 = scmp.lt.s32.totalorder %s11, 3
      %p117 = pnand %p115, %p116
      %p118 = pneg %p117
      // Predicated region
      $region25: #{_forward_fallback.1} parent=5 // pred_check
        _
      $region26: #{_forward_fallback.1} parent=5 // pred_check_branch
        %120 = sbr.rel (%p117) target = $region28
      $region27: #{_forward_fallback.1} parent=5 // pred_region
        %s121 = ssub.s32 %s11, 1
        %s122 = smul.u32 4, %s16
        %p123 = scmp.lt.s32.totalorder %s122, 7
        %s124 = scalar_select %p123, %s122, 7
        %s125 = smul.addr %s124, 2
        %s126 = scalar_lea.vmem %s0, %s125
        %p127 = pneg %p37
        %p128 = pneg %p34
        %p129 = pneg %p58
        %p130 = pneg %p55
        %p131 = pneg %p84
        %p132 = pneg %p81
        %s133 = sand.u32 %s71, 1
        %s134 = scalar_lea.sflag [#allocation4], %s133
        %s135 = sand.u32 %s71, 1
        %s136 = smul.addr %s135, 128
        %s137 = scalar_lea.vmem [#allocation3], %s136
        %s138 = smul.u32 4, %s16
        %p139 = scmp.lt.s32.totalorder %s138, 7
        %s140 = scalar_select %p139, %s138, 7
        %s141 = smul.addr %s140, 2
        %s142 = scalar_lea.vmem %s0, %s141
        %s143 = smul.u32 4, %s16
        %s144 = smul.u32 4, %s16
        %v145 = vld [vmem:[%s142] sm:$0xff]
        %v146 = vtanh.pop %v145
        %147 = vst [vmem:[#allocation2] sm:$0x3] 1.0
        %148 = vst [vmem:[#allocation2 + $0x8] sm:$0x3] 1.0
        %149 = vst [vmem:[#allocation2 + $0x10] sm:$0x3] 1.0
        %150 = vst [vmem:[#allocation2 + $0x18] sm:$0x3] 1.0
        %v152 = vcombine.low %v146, %v146
        %v154 = vunpack.c.l.s4 1983009808
        %v155 = vunpack.c.0.s8 %v154
        %v156 = vlaneseq
        %v157 = vshrl.u32 %v156, 7
        %v158 = vsub.s32 %v155, %v157
        %v159 = vrot.slane %v152, %v158
        %v161 = vunpack.c.l.s4 1983009808
        %v162 = vunpack.c.0.s8 %v161
        %v163 = vlaneseq
        %v164 = vshrl.u32 %v163, 7
        %v165 = vsub.s32 %v162, %v164
        %v166 = vrot.slane %v146, %v165
        %v167 = vcombine.high %v159, %v159
        %v168 = vcombine.high %v166, %v166
        %173 = vst [vmem:[#allocation2] sm:$0xc] %v159
        %174 = vst [vmem:[#allocation2 + $0x8] sm:$0xc] %v167
        %175 = vst [vmem:[#allocation2 + $0x10] sm:$0xc] %v166
        %176 = vst [vmem:[#allocation2 + $0x18] sm:$0xc] %v168
        %v177 = vmul.f32 %v146, 2.0
        %v178 = vmul.f32 %v177, %v146
        %v179 = vsub.f32 %v178, 1.0
        %v181 = vcombine.high %v179, %v179
        %v183 = vunpack.c.l.s4 1983009808
        %v184 = vunpack.c.0.s8 %v183
        %v185 = vlaneseq
        %v186 = vshrl.u32 %v185, 7
        %v187 = vsub.s32 %v184, %v186
        %v188 = vrot.slane %v179, %v187
        %v190 = vunpack.c.l.s4 1983009808
        %v191 = vunpack.c.0.s8 %v190
        %v192 = vlaneseq
        %v193 = vshrl.u32 %v192, 7
        %v194 = vsub.s32 %v191, %v193
        %v195 = vrot.slane %v181, %v194
        %v196 = vcombine.low %v188, %v188
        %v197 = vcombine.low %v195, %v195
        %202 = vst [vmem:[#allocation2] sm:$0x30] %v196
        %203 = vst [vmem:[#allocation2 + $0x8] sm:$0x30] %v188
        %204 = vst [vmem:[#allocation2 + $0x10] sm:$0x30] %v197
        %205 = vst [vmem:[#allocation2 + $0x18] sm:$0x30] %v195
        %v206 = vmul.f32 %v177, %v179
        %v207 = vsub.f32 %v206, %v146
        %v209 = vcombine.low %v207, %v207
        %v211 = vunpack.c.l.s4 1983009808
        %v212 = vunpack.c.0.s8 %v211
        %v213 = vlaneseq
        %v214 = vshrl.u32 %v213, 7
        %v215 = vsub.s32 %v212, %v214
        %v216 = vrot.slane %v209, %v215
        %v218 = vunpack.c.l.s4 1983009808
        %v219 = vunpack.c.0.s8 %v218
        %v220 = vlaneseq
        %v221 = vshrl.u32 %v220, 7
        %v222 = vsub.s32 %v219, %v221
        %v223 = vrot.slane %v207, %v222
        %v224 = vcombine.low %v216, %v216
        %v225 = vcombine.low %v223, %v223
        %230 = vst [vmem:[#allocation2] sm:$0xc0] %v224
        %231 = vst [vmem:[#allocation2 + $0x8] sm:$0xc0] %v216
        %232 = vst [vmem:[#allocation2 + $0x10] sm:$0xc0] %v225
        %233 = vst [vmem:[#allocation2 + $0x18] sm:$0xc0] %v223
        %v234 = vld [vmem:[#allocation2] sm:$0xff]
        %v235 = vld [vmem:[#allocation2 + $0x8] sm:$0xff]
        %v236 = vld [vmem:[#allocation2 + $0x10] sm:$0xff]
        %v237 = vld [vmem:[#allocation2 + $0x18] sm:$0xff]
        %v238 = vld [vmem:[%s1] sm:$0xff]
        %v239 = vld [vmem:[%s1 + $0x8] sm:$0xff]
        %v240 = vld [vmem:[%s1 + $0x10] sm:$0xff]
        %v241 = vld [vmem:[%s1 + $0x18] sm:$0xff]
        %vm242 = vcmask 64512
        %v244 = vsel %vm242, %v238, 0
        %v247 = vsel %vm242, %v239, 0
        %v250 = vsel %vm242, %v240, 0
        %v253 = vsel %vm242, %v241, 0
        %255 = vmatprep.subr.mxu0 %v235
        %256 = vmatpush1.msra.mxu0 %v234
        %257 = vmatprep.subr.mxu0 0.0
        %258 = vmatpush1.msra.mxu0 0.0
        %259 = vmatprep.subr.mxu0 0.0
        %260 = vmatpush1.msra.mxu0 0.0
        %261 = vmatprep.subr.mxu0 0.0
        %262 = vmatpush1.msra.mxu0 0.0
        %263 = vmatprep.subr.mxu0 0.0
        %264 = vmatpush1.msra.mxu0 0.0
        %265 = vmatprep.subr.mxu0 0.0
        %266 = vmatpush1.msra.mxu0 0.0
        %267 = vmatprep.subr.mxu0 0.0
        %268 = vmatpush1.msra.mxu0 0.0
        %269 = vmatprep.subr.mxu0 0.0
        %270 = vmatpush1.msra.mxu0 0.0
        %271 = vmatprep.subr.mxu0 0.0
        %272 = vmatpush1.msra.mxu0 0.0
        %273 = vmatprep.subr.mxu0 0.0
        %274 = vmatpush1.msra.mxu0 0.0
        %275 = vmatprep.subr.mxu0 0.0
        %276 = vmatpush1.msra.mxu0 0.0
        %277 = vmatprep.subr.mxu0 0.0
        %278 = vmatpush1.msra.mxu0 0.0
        %279 = vmatprep.subr.mxu0 0.0
        %280 = vmatpush1.msra.mxu0 0.0
        %281 = vmatprep.subr.mxu0 0.0
        %282 = vmatpush1.msra.mxu0 0.0
        %283 = vmatprep.subr.mxu0 0.0
        %284 = vmatpush1.msra.mxu0 0.0
        %285 = vmatprep.subr.mxu0 0.0
        %286 = vmatpush1.msra.mxu0 0.0
        %287 = vmatprep.subr.mxu0 0.0
        %288 = vmatpush1.msra.mxu0 0.0
        %289 = vmatprep.subr.mxu0 0.0
        %290 = vmatpush1.msra.mxu0 0.0
        %291 = vmatprep.subr.mxu0 0.0
        %292 = vmatpush1.msra.mxu0 0.0
        %293 = vmatprep.subr.mxu0 0.0
        %294 = vmatpush1.msra.mxu0 0.0
        %295 = vmatprep.subr.mxu0 0.0
        %296 = vmatpush1.msra.mxu0 0.0
        %297 = vmatprep.subr.mxu0 0.0
        %298 = vmatpush1.msra.mxu0 0.0
        %299 = vmatprep.subr.mxu0 0.0
        %300 = vmatpush1.msra.mxu0 0.0
        %301 = vmatprep.subr.mxu0 0.0
        %302 = vmatpush1.msra.mxu0 0.0
        %303 = vmatprep.subr.mxu0 0.0
        %304 = vmatpush1.msra.mxu0 0.0
        %305 = vmatprep.subr.mxu0 0.0
        %306 = vmatpush1.msra.mxu0 0.0
        %307 = vmatprep.subr.mxu0 0.0
        %308 = vmatpush1.msra.mxu0 0.0
        %309 = vmatprep.subr.mxu0 0.0
        %310 = vmatpush1.msra.mxu0 0.0
        %311 = vmatprep.subr.mxu0 0.0
        %312 = vmatpush1.msra.mxu0 0.0
        %313 = vmatprep.subr.mxu0 0.0
        %314 = vmatpush1.msra.mxu0 0.0
        %315 = vmatprep.subr.mxu0 0.0
        %316 = vmatpush1.msra.mxu0 0.0
        %317 = vmatprep.subr.mxu0 0.0
        %318 = vmatpush1.msra.mxu0 0.0
        %319 = vmatprep.mubr.f32.mxu0 0.0
        %320 = vmatmul.mubr.f32.gmra.mrb[0].mxu0 %v244
        %v321 = vpop.f32.mrb[0].mxu0
        %v322 = vadd.f32 0.0, %v321
        %v323 = vpop.f32.mrb[0].mxu0
        %v324 = vadd.f32 0.0, %v323
        %325 = vmatprep.mubr.f32.mxu0 0.0
        %326 = vmatmul.mubr.f32.gmra.mrb[0].mxu0 %v247
        %v327 = vpop.f32.mrb[0].mxu0
        %v328 = vadd.f32 0.0, %v327
        %v329 = vpop.f32.mrb[0].mxu0
        %v330 = vadd.f32 0.0, %v329
        %331 = vmatprep.mubr.f32.mxu0 0.0
        %332 = vmatmul.mubr.f32.gmra.mrb[0].mxu0 %v250
        %v333 = vpop.f32.mrb[0].mxu0
        %v334 = vadd.f32 0.0, %v333
        %v335 = vpop.f32.mrb[0].mxu0
        %v336 = vadd.f32 0.0, %v335
        %337 = vmatprep.mubr.f32.mxu0 0.0
        %338 = vmatmul.mubr.f32.gmra.mrb[0].mxu0 %v253
        %v339 = vpop.f32.mrb[0].mxu0
        %v340 = vadd.f32 0.0, %v339
        %v341 = vpop.f32.mrb[0].mxu0
        %v342 = vadd.f32 0.0, %v341
        %343 = vdwg.mxu0
        %344 = vmatprep.subr.mxu0 %v237
        %345 = vmatpush1.msra.mxu0 %v236
        %346 = vmatprep.subr.mxu0 0.0
        %347 = vmatpush1.msra.mxu0 0.0
        %348 = vmatprep.subr.mxu0 0.0
        %349 = vmatpush1.msra.mxu0 0.0
        %350 = vmatprep.subr.mxu0 0.0
        %351 = vmatpush1.msra.mxu0 0.0
        %352 = vmatprep.subr.mxu0 0.0
        %353 = vmatpush1.msra.mxu0 0.0
        %354 = vmatprep.subr.mxu0 0.0
        %355 = vmatpush1.msra.mxu0 0.0
        %356 = vmatprep.subr.mxu0 0.0
        %357 = vmatpush1.msra.mxu0 0.0
        %358 = vmatprep.subr.mxu0 0.0
        %359 = vmatpush1.msra.mxu0 0.0
        %360 = vmatprep.subr.mxu0 0.0
        %361 = vmatpush1.msra.mxu0 0.0
        %362 = vmatprep.subr.mxu0 0.0
        %363 = vmatpush1.msra.mxu0 0.0
        %364 = vmatprep.subr.mxu0 0.0
        %365 = vmatpush1.msra.mxu0 0.0
        %366 = vmatprep.subr.mxu0 0.0
        %367 = vmatpush1.msra.mxu0 0.0
        %368 = vmatprep.subr.mxu0 0.0
        %369 = vmatpush1.msra.mxu0 0.0
        %370 = vmatprep.subr.mxu0 0.0
        %371 = vmatpush1.msra.mxu0 0.0
        %372 = vmatprep.subr.mxu0 0.0
        %373 = vmatpush1.msra.mxu0 0.0
        %374 = vmatprep.subr.mxu0 0.0
        %375 = vmatpush1.msra.mxu0 0.0
        %376 = vmatprep.subr.mxu0 0.0
        %377 = vmatpush1.msra.mxu0 0.0
        %378 = vmatprep.subr.mxu0 0.0
        %379 = vmatpush1.msra.mxu0 0.0
        %380 = vmatprep.subr.mxu0 0.0
        %381 = vmatpush1.msra.mxu0 0.0
        %382 = vmatprep.subr.mxu0 0.0
        %383 = vmatpush1.msra.mxu0 0.0
        %384 = vmatprep.subr.mxu0 0.0
        %385 = vmatpush1.msra.mxu0 0.0
        %386 = vmatprep.subr.mxu0 0.0
        %387 = vmatpush1.msra.mxu0 0.0
        %388 = vmatprep.subr.mxu0 0.0
        %389 = vmatpush1.msra.mxu0 0.0
        %390 = vmatprep.subr.mxu0 0.0
        %391 = vmatpush1.msra.mxu0 0.0
        %392 = vmatprep.subr.mxu0 0.0
        %393 = vmatpush1.msra.mxu0 0.0
        %394 = vmatprep.subr.mxu0 0.0
        %395 = vmatpush1.msra.mxu0 0.0
        %396 = vmatprep.subr.mxu0 0.0
        %397 = vmatpush1.msra.mxu0 0.0
        %398 = vmatprep.subr.mxu0 0.0
        %399 = vmatpush1.msra.mxu0 0.0
        %400 = vmatprep.subr.mxu0 0.0
        %401 = vmatpush1.msra.mxu0 0.0
        %402 = vmatprep.subr.mxu0 0.0
        %403 = vmatpush1.msra.mxu0 0.0
        %404 = vmatprep.subr.mxu0 0.0
        %405 = vmatpush1.msra.mxu0 0.0
        %406 = vmatprep.subr.mxu0 0.0
        %407 = vmatpush1.msra.mxu0 0.0
        %408 = vmatprep.mubr.f32.mxu0 0.0
        %409 = vmatmul.mubr.f32.gmra.mrb[0].mxu0 %v244
        %v410 = vpop.f32.mrb[0].mxu0
        %v411 = vadd.f32 0.0, %v410
        %v412 = vpop.f32.mrb[0].mxu0
        %v413 = vadd.f32 0.0, %v412
        %414 = vmatprep.mubr.f32.mxu0 0.0
        %415 = vmatmul.mubr.f32.gmra.mrb[0].mxu0 %v247
        %v416 = vpop.f32.mrb[0].mxu0
        %v417 = vadd.f32 0.0, %v416
        %v418 = vpop.f32.mrb[0].mxu0
        %v419 = vadd.f32 0.0, %v418
        %420 = vmatprep.mubr.f32.mxu0 0.0
        %421 = vmatmul.mubr.f32.gmra.mrb[0].mxu0 %v250
        %v422 = vpop.f32.mrb[0].mxu0
        %v423 = vadd.f32 0.0, %v422
        %v424 = vpop.f32.mrb[0].mxu0
        %v425 = vadd.f32 0.0, %v424
        %426 = vmatprep.mubr.f32.mxu0 0.0
        %427 = vmatmul.mubr.f32.gmra.mrb[0].mxu0 %v253
        %v428 = vpop.f32.mrb[0].mxu0
        %v429 = vadd.f32 0.0, %v428
        %v430 = vpop.f32.mrb[0].mxu0
        %v431 = vadd.f32 0.0, %v430
        %432 = vdwg.mxu0
        %433 = vst [vmem:[%s137] sm:$0xff] %v322
        %434 = vst [vmem:[%s137 + $0x8] sm:$0xff] %v324
        %435 = vst [vmem:[%s137 + $0x10] sm:$0xff] %v411
        %436 = vst [vmem:[%s137 + $0x18] sm:$0xff] %v413
        %437 = vst [vmem:[%s137 + $0x20] sm:$0xff] %v328
        %438 = vst [vmem:[%s137 + $0x28] sm:$0xff] %v330
        %439 = vst [vmem:[%s137 + $0x30] sm:$0xff] %v417
        %440 = vst [vmem:[%s137 + $0x38] sm:$0xff] %v419
        %441 = vst [vmem:[%s137 + $0x40] sm:$0xff] %v334
        %442 = vst [vmem:[%s137 + $0x48] sm:$0xff] %v336
        %443 = vst [vmem:[%s137 + $0x50] sm:$0xff] %v423
        %444 = vst [vmem:[%s137 + $0x58] sm:$0xff] %v425
        %445 = vst [vmem:[%s137 + $0x60] sm:$0xff] %v340
        %446 = vst [vmem:[%s137 + $0x68] sm:$0xff] %v342
        %447 = vst [vmem:[%s137 + $0x70] sm:$0xff] %v429
        %448 = vst [vmem:[%s137 + $0x78] sm:$0xff] %v431
        %s449 = sand.u32 %s71, 1
        %s450 = scalar_lea.sflag [#allocation4], %s449
        %s451 = sand.u32 %s71, 1
        %s452 = smul.addr %s451, 128
        %s453 = scalar_lea.vmem [#allocation3], %s452
        // Predicated region
        $region29: #{_forward_fallback.1} parent=27 // pred_check
          %p454 = pneg %p81
        $region30: #{_forward_fallback.1} parent=27 // pred_check_branch
          %456 = sbr.rel (%p454) target = $region32
        $region31: #{_forward_fallback.1} parent=27 // pred_region
          %s457 = smul.u32 4, %s16
          %s459 = ssub.s32 2048, 2048
          %460 = vsyncadd %s450, %s459
          %s461 = smul.addr %s457, 128
          %s462 = scalar_lea.hbm %s2, %s461
          %s463 = sshll.u32 %s453, 4
          %s464 = int_to_ptr.vmem [resolvable:$true] %s463
          %469 = dma.vmem_to_hbm [thread:$0]  %s464, 2048, %s462, %s450, 512, 1024, 32
        $region32: #{_forward_fallback.1} parent=27 // pred_fallthru
          _
      $region28: #{_forward_fallback.1} parent=5 // pred_fallthru
        _
      %p470 = scmp.le.s32.totalorder 2, %s11
      // Predicated region
      $region33: #{_forward_fallback.1} parent=5 // pred_check
        %p471 = pneg %p470
      $region34: #{_forward_fallback.1} parent=5 // pred_check_branch
        %473 = sbr.rel (%p471) target = $region36
      $region35: #{_forward_fallback.1} parent=5 // pred_region
        %s474 = ssub.s32 %s11, 2
        // Predicated region
        $region37: #{_forward_fallback.1} parent=35 // pred_check
          %p475 = pneg %p87
        $region38: #{_forward_fallback.1} parent=35 // pred_check_branch
          %477 = sbr.rel (%p475) target = $region40
        $region39: #{_forward_fallback.1} parent=35 // pred_region
          %s478 = sand.u32 %s72, 1
          %s479 = scalar_lea.sflag [#allocation4], %s478
          %s480 = sand.u32 %s72, 1
          %s481 = smul.addr %s480, 128
          %s482 = scalar_lea.vmem [#allocation3], %s481
          %483 = dma.done %s479, 2048
        $region40: #{_forward_fallback.1} parent=35 // pred_fallthru
          _
      $region36: #{_forward_fallback.1} parent=5 // pred_fallthru
        _
    $region6: #{_forward_fallback.1} parent=1 // loop_footer
      %s15 = sadd.s32 1, %s11
    $region7: #{_forward_fallback.1} parent=1 // loop_footer_branch
      %10 = sbr.rel target = $region3
    $region8: #{_forward_fallback.1} parent=1 // loop_exit
      _
    %484 = vsyncpa [#allocation4], 1
    %s485 = scalar_lea.sflag [#allocation4], 1
    %486 = vsyncpa %s485, 1

</llo_original>
